<compile_context>
chip_gen: v6e
topology: v6e:2x2x1
jax: 0.10.0
libtpu: 0.0.40
codegen_flags: <defaults>
</compile_context>

<pallas_src>
import functools
import math

import jax
import jax.numpy as jnp
from jax.experimental import pallas as pl
from jax.experimental.pallas import tpu as pltpu


def _round_up(x, m):
    return ((x + m - 1) // m) * m


# --------------------------------------------------------------------------
# speechbrain glue ported 1:1 (padding arithmetic, quaternion weight algebra)
# --------------------------------------------------------------------------
def _get_padding_elem(L_in, stride, kernel_size, dilation):
    # Faithful port of speechbrain.nnet.CNN.get_padding_elem
    if stride > 1:
        return [kernel_size // 2, kernel_size // 2]
    L_out = (L_in - dilation * (kernel_size - 1) - 1) // stride + 1
    return [(L_in - L_out) // 2, (L_in - L_out) // 2]


def _quaternion_cat_weight(r, i, j, k):
    # Hamilton-product block structure, identical to quaternion_conv_op
    cat_r = jnp.concatenate([r, -i, -j, -k], axis=1)
    cat_i = jnp.concatenate([i, r, -k, j], axis=1)
    cat_j = jnp.concatenate([j, k, r, -i], axis=1)
    cat_k = jnp.concatenate([k, -j, i, r], axis=1)
    return jnp.concatenate([cat_r, cat_i, cat_j, cat_k], axis=0)  # (4O, 4I, kH, kW)


_PAD_MODE = {"reflect": "reflect", "replicate": "edge",
             "zeros": "constant", "constant": "constant", "circular": "wrap"}


# --------------------------------------------------------------------------
# Fused conv kernel (stride == 1): im2col + matmul + bias, all inside Pallas.
# --------------------------------------------------------------------------
def _fused_conv_kernel(x_ref, w_ref, b_ref, o_ref, acc_ref, *, kW, kH, dil, tR, D2out):
    # x_ref : (1, D1pad_ext, D2pad, C)  bf16  whole padded image of one batch (resident)
    # w_ref : (kW, kH, C, Npad)         bf16  full quaternion weight (resident)
    # b_ref : (1, Npad)                 f32   bias row
    # o_ref : (1, tR*D2out, Npad)             one tile of tR output d1-rows
    # acc_ref: (tR*D2out, Npad)         f32   VMEM accumulator
    j = pl.program_id(1)
    r0 = j * tR                      # first output row of this tile (stride == 1)
    C = x_ref.shape[-1]
    acc_ref[...] = jnp.zeros_like(acc_ref)
    for kw in range(kW):             # static unroll over the kernel taps
        for kh in range(kH):
            a = x_ref[0, pl.ds(r0 + kw * dil, tR), pl.ds(kh * dil, D2out), :]
            acc_ref[...] += jnp.dot(a.reshape(tR * D2out, C), w_ref[kw, kh],
                                    preferred_element_type=jnp.float32)
    o_ref[0] = (acc_ref[...] + b_ref[...]).astype(o_ref.dtype)


def _fused_qconv(x_pad, w_pad, b_row, *, kW, kH, dil, D2out, tR, nR, out_dtype):
    B, D1pe, D2pad, C = x_pad.shape
    Npad = w_pad.shape[-1]
    M_tile = tR * D2out

    kern = functools.partial(_fused_conv_kernel, kW=kW, kH=kH, dil=dil,
                             tR=tR, D2out=D2out)

    flops = 2 * B * nR * M_tile * Npad * (kW * kH * C)
    bytes_accessed = (B * D1pe * D2pad * C * 2            # bf16 input, read once
                      + kW * kH * C * Npad * 2            # bf16 weight
                      + Npad * 4                          # bias
                      + B * nR * M_tile * Npad * jnp.dtype(out_dtype).itemsize)

    # VMEM budget: double-buffered input image / weight / bias / output tile + accumulator.
    est = (2 * D1pe * D2pad * C * 2 + 2 * kW * kH * C * Npad * 2 + 2 * Npad * 4
           + 2 * M_tile * Npad * jnp.dtype(out_dtype).itemsize + M_tile * Npad * 4)
    vmem_limit = int(min(max(2 * est, 32 * 2**20), 110 * 2**20))

    out = pl.pallas_call(
        kern,
        out_shape=jax.ShapeDtypeStruct((B * nR, M_tile, Npad), out_dtype),
        grid_spec=pltpu.PrefetchScalarGridSpec(
            num_scalar_prefetch=0,
            grid=(B, nR),
            in_specs=[
                # whole padded image of batch b: same block for every j -> DMA'd once per batch
                pl.BlockSpec((1, D1pe, D2pad, C), lambda b, j: (b, 0, 0, 0)),
                pl.BlockSpec((kW, kH, C, Npad), lambda b, j: (0, 0, 0, 0)),
                pl.BlockSpec((1, Npad), lambda b, j: (0, 0)),
            ],
            out_specs=pl.BlockSpec((1, M_tile, Npad), lambda b, j: (b * nR + j, 0, 0)),
            scratch_shapes=[pltpu.VMEM((M_tile, Npad), jnp.float32)],
        ),
        compiler_params=pltpu.CompilerParams(
            dimension_semantics=("parallel", "parallel"),
            vmem_limit_bytes=vmem_limit),
        cost_estimate=pl.CostEstimate(flops=flops, transcendentals=0,
                                      bytes_accessed=bytes_accessed),
    )(x_pad, w_pad, b_row)
    return out  # (B*nR, tR*D2out, Npad)


# --------------------------------------------------------------------------
# Fallback (stride > 1): im2col in JAX + Pallas MXU matmul with fused bias.
# --------------------------------------------------------------------------
def _mm_bias_kernel(p_ref, w_ref, b_ref, o_ref):
    acc = jnp.dot(p_ref[...], w_ref[...], preferred_element_type=jnp.float32)
    o_ref[...] = (acc + b_ref[...]).astype(o_ref.dtype)


def _matmul_bias(patches, weight, b_row, out_dtype, tm=512):
    M, K = patches.shape
    _, Npad = weight.shape
    tm = min(tm, _round_up(M, 8))
    Mp = _round_up(M, tm)
    if Mp != M:
        patches = jnp.pad(patches, ((0, Mp - M), (0, 0)))
    out = pl.pallas_call(
        _mm_bias_kernel,
        out_shape=jax.ShapeDtypeStruct((Mp, Npad), out_dtype),
        grid_spec=pltpu.PrefetchScalarGridSpec(
            num_scalar_prefetch=0,
            grid=(Mp // tm,),
            in_specs=[
                pl.BlockSpec((tm, K), lambda i: (i, 0)),
                pl.BlockSpec((K, Npad), lambda i: (0, 0)),
                pl.BlockSpec((1, Npad), lambda i: (0, 0)),
            ],
            out_specs=pl.BlockSpec((tm, Npad), lambda i: (i, 0)),
        ),
        compiler_params=pltpu.CompilerParams(dimension_semantics=("parallel",)),
        cost_estimate=pl.CostEstimate(
            flops=2 * Mp * K * Npad, transcendentals=0,
            bytes_accessed=Mp * K * 2 + K * Npad * 2 + Npad * 4 + Mp * Npad * 4),
    )(patches, weight, b_row)
    return out[:M]


# --------------------------------------------------------------------------
# Module
# --------------------------------------------------------------------------
class QConv2dPallas:
    """Forward-only JAX/Pallas port of speechbrain QConv2d (spinor=False path)."""

    def __init__(self, out_channels, kernel_size, input_shape, stride=1, dilation=1,
                 padding="same", groups=1, bias=True, padding_mode="reflect", key=None):
        if isinstance(kernel_size, int):
            kernel_size = (kernel_size, kernel_size)
        if isinstance(stride, int):
            stride = (stride, stride)
        if isinstance(dilation, int):
            dilation = (dilation, dilation)
        if kernel_size[0] % 2 == 0 or kernel_size[1] % 2 == 0:
            raise ValueError("kernel size must be odd")
        if len(input_shape) != 4 or input_shape[-1] % 4 != 0:
            raise ValueError("expects 4d input with channels divisible by 4")
        if groups != 1:
            raise NotImplementedError("groups != 1")
        # TODO(synk): spinor / vector_scale rotation path (W*x*W^-1) not implemented
        #             (module default spinor=False -> plain Hamilton convolution).

        self.out_channels = out_channels
        self.kernel_size = kernel_size
        self.stride = stride
        self.dilation = dilation
        self.padding = padding
        self.padding_mode = padding_mode
        self.has_bias = bias
        self.in_channels = input_shape[-1] // 4

        O, I = out_channels, self.in_channels
        kH, kW = kernel_size
        key = jax.random.PRNGKey(0) if key is None else key
        kr, ki, kj, kk = jax.random.split(key, 4)
        # TODO(synk): exact quaternion polar-form init (quaternion_init) not replicated;
        #             init only, forward semantics are unaffected.
        fan_in, fan_out = I * kH * kW, O * kH * kW
        s = 1.0 / math.sqrt(2.0 * (fan_in + fan_out))
        shp = (O, I, kH, kW)
        r = jax.random.uniform(kr, shp, jnp.float32, -s, s)
        i = jax.random.uniform(ki, shp, jnp.float32, -s, s)
        j = jax.random.uniform(kj, shp, jnp.float32, -s, s)
        k = jax.random.uniform(kk, shp, jnp.float32, -s, s)
        self.cat_weight = _quaternion_cat_weight(r, i, j, k)          # (4O, 4I, kH, kW)
        # channels-last taps: w_taps[kw, kh, ci, co] == cat_weight[co, ci, kh, kw]
        self.w_taps = jnp.transpose(self.cat_weight, (3, 2, 1, 0))    # (kW, kH, 4I, 4O)
        # bias initialised to zero exactly like the module (b.data.fill_(0))
        self.bias_vec = jnp.zeros((4 * O,), jnp.float32)

        self._jit_forward = jax.jit(self._forward)

    def set_bias(self, b):
        self.bias_vec = jnp.asarray(b, jnp.float32).reshape(4 * self.out_channels)

    # ---- "same" padding applied directly on the channels-last layout ----
    def _pad_cl(self, x):
        if self.padding == "same":
            kH, kW = self.kernel_size
            # Faithful to the module: both axes use x.shape[-1] (d1 after the transpose).
            L_in = x.shape[1]
            pt = _get_padding_elem(L_in, self.stride[-1], kW, self.dilation[-1])
            pf = _get_padding_elem(L_in, self.stride[-2], kH, self.dilation[-2])
            return jnp.pad(x, ((0, 0), (pt[0], pt[1]), (pf[0], pf[1]), (0, 0)),
                           mode=_PAD_MODE[self.padding_mode])
        if self.padding == "valid":
            return x
        raise ValueError("Padding must be 'same' or 'valid'")

    def _forward(self, x, w_taps, bias_vec):
        B = x.shape[0]
        C = 4 * self.in_channels
        kH, kW = self.kernel_size
        # The module calls F.conv2d with scalar stride[0] / dilation[0] for both dims.
        s, dil = self.stride[0], self.dilation[0]
        N = 4 * self.out_channels
        Npad = _round_up(N, 128)          # lane-dense output channels

        x_pad = self._pad_cl(x)
        D1p, D2p = x_pad.shape[1], x_pad.shape[2]
        D1out = (D1p - dil * (kW - 1) - 1) // s + 1
        D2out = (D2p - dil * (kH - 1) - 1) // s + 1

        # bf16 operands, f32 accumulation on the MXU.
        w_pad = jnp.zeros((kW, kH, C, Npad), jnp.bfloat16).at[..., :N].set(
            w_taps.astype(jnp.bfloat16))
        b_row = jnp.zeros((1, Npad), jnp.float32).at[0, :N].set(bias_vec)
        x_bf16 = x_pad.astype(jnp.bfloat16)

        if s == 1 and D2out % 8 == 0:
            # -------- fused path: conv computed straight from the padded image --------
            tR = max(1, min(D1out, max(1, 512 // D2out)))     # ~512-row MXU tiles
            nR = pl.cdiv(D1out, tR)
            D1out_p = nR * tR
            ext = D1out_p - D1out
            if ext:
                x_bf16 = jnp.pad(x_bf16, ((0, 0), (0, ext), (0, 0), (0, 0)))
            out = _fused_qconv(x_bf16, w_pad, b_row, kW=kW, kH=kH, dil=dil,
                               D2out=D2out, tR=tR, nR=nR, out_dtype=jnp.float32)
            out = out.reshape(B, D1out_p, D2out, Npad)
            return out[:, :D1out, :, :N]

        # -------- fallback: im2col + Pallas matmul (stride > 1 etc.) --------
        # TODO(synk): fused strided path not implemented; this still uses bf16 MXU
        #             matmul with lane-dense output but materializes the patch tensor.
        cols = []
        for kw in range(kW):
            for kh in range(kH):
                h0, w0 = kw * dil, kh * dil
                cols.append(x_bf16[:, h0:h0 + (D1out - 1) * s + 1:s,
                                   w0:w0 + (D2out - 1) * s + 1:s, :])
        patches = jnp.concatenate(cols, axis=-1).reshape(B * D1out * D2out, kW * kH * C)
        w_mat = w_pad.reshape(kW * kH * C, Npad)
        out = _matmul_bias(patches, w_mat, b_row, jnp.float32)
        return out.reshape(B, D1out, D2out, Npad)[..., :N]

    def __call__(self, x):
        return self._jit_forward(x, self.w_taps, self.bias_vec)

    # ---- references ----
    def reference(self, x, *, bf16=True):
        """Channels-last lax.conv reference (same bf16 quantization when bf16=True)."""
        x_pad = self._pad_cl(x)
        s, dil = self.stride[0], self.dilation[0]
        lhs = x_pad.astype(jnp.bfloat16) if bf16 else x_pad
        rhs = self.w_taps.astype(jnp.bfloat16) if bf16 else self.w_taps
        out = jax.lax.conv_general_dilated(
            lhs, rhs, window_strides=(s, s), padding="VALID",
            rhs_dilation=(dil, dil),
            dimension_numbers=("NHWC", "HWIO", "NHWC"),
            preferred_element_type=jnp.float32)
        return out + self.bias_vec.reshape(1, 1, 1, -1)

    def reference_original(self, x):
        """Mirrors the PyTorch forward exactly: NCHW transpose, pad, conv, transpose back."""
        x_t = jnp.swapaxes(x, 1, -1)                  # (B, C, d2, d1)
        if self.padding == "same":
            kH, kW = self.kernel_size
            L_in = x_t.shape[-1]
            pt = _get_padding_elem(L_in, self.stride[-1], kW, self.dilation[-1])
            pf = _get_padding_elem(L_in, self.stride[-2], kH, self.dilation[-2])
            x_t = jnp.pad(x_t, ((0, 0), (0, 0), (pf[0], pf[1]), (pt[0], pt[1])),
                          mode=_PAD_MODE[self.padding_mode])
        s, dil = self.stride[0], self.dilation[0]
        out = jax.lax.conv_general_dilated(
            x_t, self.cat_weight, window_strides=(s, s), padding="VALID",
            rhs_dilation=(dil, dil), dimension_numbers=("NCHW", "OIHW", "NCHW"),
            preferred_element_type=jnp.float32)
        out = out + self.bias_vec.reshape(1, -1, 1, 1)
        return jnp.swapaxes(out, 1, -1)


if __name__ == "__main__":
    key = jax.random.PRNGKey(0)
    # channels-last input consistent with the module: (batch, d1, d2, 4*in_ch)
    B, d1, d2, C = 2, 4, 16, 8          # 8 channels -> 2 quaternion input neurons
    out_channels = 8                     # -> 32 output channels
    kx, kb = jax.random.split(key)
    x = jax.random.normal(kx, (B, d1, d2, C), jnp.float32)

    layer = QConv2dPallas(out_channels=out_channels, kernel_size=3,
                          input_shape=(B, d1, d2, C), key=jax.random.PRNGKey(1))
    # Exercise the fused bias path with a nonzero bias (module init is zero).
    layer.set_bias(0.1 * jax.random.normal(kb, (4 * out_channels,), jnp.float32))

    out = jax.block_until_ready(layer(x))
    assert out.shape == (B, d1, d2, 4 * out_channels), out.shape

    # Tight check against a reference that applies the same bf16 quantization.
    ref_bf16 = jax.block_until_ready(layer.reference(x, bf16=True))
    err = float(jnp.max(jnp.abs(out - ref_bf16)))
    assert jnp.allclose(out, ref_bf16, atol=2e-3, rtol=2e-3), err

    # Loose check against the full-precision original-layout (NCHW) forward.
    ref_f32 = jax.block_until_ready(layer.reference_original(x))
    err2 = float(jnp.max(jnp.abs(out - ref_f32)))
    assert jnp.allclose(out, ref_f32, atol=5e-2, rtol=5e-2), err2

    print("KERNEL_OK")
</pallas_src>

<mosaic_0001>
module attributes {stable_mosaic.version = 11 : i64} {
  func.func @_fused_conv_kernel(%arg0: i32, %arg1: i32, %arg2: memref<1x6x18x8xbf16, #tpu.memory_space<vmem>>, %arg3: memref<3x3x8x128xbf16, #tpu.memory_space<vmem>>, %arg4: memref<1x128xf32, #tpu.memory_space<vmem>>, %arg5: memref<1x64x128xf32, #tpu.memory_space<vmem>>, %arg6: memref<64x128xf32, #tpu.memory_space<vmem>>) attributes {dimension_semantics = [#tpu.dimension_semantics<parallel>, #tpu.dimension_semantics<parallel>], iteration_bounds = array<i64: 2, 1>, scalar_prefetch = 0 : i64, scratch_operands = 1 : i64, tpu.core_type = #tpu.core_type<tc>, window_params = [{transform_indices = @transform_0, window_bounds = array<i64: 1, 6, 18, 8>}, {pipeline_mode = #tpu.pipeline_mode<synchronous>, transform_indices = @transform_1, window_bounds = array<i64: 3, 3, 8, 128>}, {pipeline_mode = #tpu.pipeline_mode<synchronous>, transform_indices = @transform_2, window_bounds = array<i64: 1, 128>}, {transform_indices = @transform_3, window_bounds = array<i64: 1, 64, 128>}]} {
    %c4_i32 = arith.constant 4 : i32
    %0 = arith.muli %arg1, %c4_i32 : i32
    %cst = arith.constant 0.000000e+00 : f32
    %1 = vector.broadcast %cst : f32 to vector<64x128xf32>
    %c0 = arith.constant 0 : index
    %c0_0 = arith.constant 0 : index
    %2 = vector.load %arg6[%c0, %c0_0] : memref<64x128xf32, #tpu.memory_space<vmem>>, vector<64x128xf32>
    tpu.vector_store %arg6[%c0, %c0_0], %1 {strides = array<i32>} : memref<64x128xf32, #tpu.memory_space<vmem>>, vector<64x128xf32>,
    %c0_i32 = arith.constant 0 : i32
    %3 = arith.addi %0, %c0_i32 : i32
    %c0_1 = arith.constant 0 : index
    %4 = arith.index_cast %3 : i32 to index
    %c0_2 = arith.constant 0 : index
    %c0_3 = arith.constant 0 : index
    %5 = vector.load %arg2[%c0_1, %4, %c0_2, %c0_3] : memref<1x6x18x8xbf16, #tpu.memory_space<vmem>>, vector<1x4x16x8xbf16>
    %6 = vector.shape_cast %5 : vector<1x4x16x8xbf16> to vector<4x16x8xbf16>
    %c0_4 = arith.constant 0 : index
    %c0_5 = arith.constant 0 : index
    %7 = vector.load %arg6[%c0_4, %c0_5] : memref<64x128xf32, #tpu.memory_space<vmem>>, vector<64x128xf32>
    %8 = vector.shape_cast %6 : vector<4x16x8xbf16> to vector<64x8xbf16>
    %c0_6 = arith.constant 0 : index
    %c0_7 = arith.constant 0 : index
    %c0_8 = arith.constant 0 : index
    %c0_9 = arith.constant 0 : index
    %9 = vector.load %arg3[%c0_6, %c0_7, %c0_8, %c0_9] : memref<3x3x8x128xbf16, #tpu.memory_space<vmem>>, vector<1x1x8x128xbf16>
    %10 = vector.shape_cast %9 : vector<1x1x8x128xbf16> to vector<8x128xbf16>
    %cst_10 = arith.constant dense<0.000000e+00> : vector<64x128xf32>
    %11 = tpu.matmul %8, %10, %cst_10 {dimension_numbers = #tpu.dot_dimension_numbers<[1], [0], [0], [1], [0, 0, 1, 1], [], []>} : vector<64x8xbf16>, vector<8x128xbf16>, vector<64x128xf32> -> vector<64x128xf32>
    %12 = arith.addf %7, %11 : vector<64x128xf32>
    %c0_11 = arith.constant 0 : index
    %c0_12 = arith.constant 0 : index
    %13 = vector.load %arg6[%c0_11, %c0_12] : memref<64x128xf32, #tpu.memory_space<vmem>>, vector<64x128xf32>
    tpu.vector_store %arg6[%c0_11, %c0_12], %12 {strides = array<i32>} : memref<64x128xf32, #tpu.memory_space<vmem>>, vector<64x128xf32>,
    %c0_i32_13 = arith.constant 0 : i32
    %14 = arith.addi %0, %c0_i32_13 : i32
    %c0_14 = arith.constant 0 : index
    %15 = arith.index_cast %14 : i32 to index
    %c1 = arith.constant 1 : index
    %c0_15 = arith.constant 0 : index
    %16 = vector.load %arg2[%c0_14, %15, %c1, %c0_15] : memref<1x6x18x8xbf16, #tpu.memory_space<vmem>>, vector<1x4x16x8xbf16>
    %17 = vector.shape_cast %16 : vector<1x4x16x8xbf16> to vector<4x16x8xbf16>
    %c0_16 = arith.constant 0 : index
    %c0_17 = arith.constant 0 : index
    %18 = vector.load %arg6[%c0_16, %c0_17] : memref<64x128xf32, #tpu.memory_space<vmem>>, vector<64x128xf32>
    %19 = vector.shape_cast %17 : vector<4x16x8xbf16> to vector<64x8xbf16>
    %c0_18 = arith.constant 0 : index
    %c1_19 = arith.constant 1 : index
    %c0_20 = arith.constant 0 : index
    %c0_21 = arith.constant 0 : index
    %20 = vector.load %arg3[%c0_18, %c1_19, %c0_20, %c0_21] : memref<3x3x8x128xbf16, #tpu.memory_space<vmem>>, vector<1x1x8x128xbf16>
    %21 = vector.shape_cast %20 : vector<1x1x8x128xbf16> to vector<8x128xbf16>
    %cst_22 = arith.constant dense<0.000000e+00> : vector<64x128xf32>
    %22 = tpu.matmul %19, %21, %cst_22 {dimension_numbers = #tpu.dot_dimension_numbers<[1], [0], [0], [1], [0, 0, 1, 1], [], []>} : vector<64x8xbf16>, vector<8x128xbf16>, vector<64x128xf32> -> vector<64x128xf32>
    %23 = arith.addf %18, %22 : vector<64x128xf32>
    %c0_23 = arith.constant 0 : index
    %c0_24 = arith.constant 0 : index
    %24 = vector.load %arg6[%c0_23, %c0_24] : memref<64x128xf32, #tpu.memory_space<vmem>>, vector<64x128xf32>
    tpu.vector_store %arg6[%c0_23, %c0_24], %23 {strides = array<i32>} : memref<64x128xf32, #tpu.memory_space<vmem>>, vector<64x128xf32>,
    %c0_i32_25 = arith.constant 0 : i32
    %25 = arith.addi %0, %c0_i32_25 : i32
    %c0_26 = arith.constant 0 : index
    %26 = arith.index_cast %25 : i32 to index
    %c2 = arith.constant 2 : index
    %c0_27 = arith.constant 0 : index
    %27 = vector.load %arg2[%c0_26, %26, %c2, %c0_27] : memref<1x6x18x8xbf16, #tpu.memory_space<vmem>>, vector<1x4x16x8xbf16>
    %28 = vector.shape_cast %27 : vector<1x4x16x8xbf16> to vector<4x16x8xbf16>
    %c0_28 = arith.constant 0 : index
    %c0_29 = arith.constant 0 : index
    %29 = vector.load %arg6[%c0_28, %c0_29] : memref<64x128xf32, #tpu.memory_space<vmem>>, vector<64x128xf32>
    %30 = vector.shape_cast %28 : vector<4x16x8xbf16> to vector<64x8xbf16>
    %c0_30 = arith.constant 0 : index
    %c2_31 = arith.constant 2 : index
    %c0_32 = arith.constant 0 : index
    %c0_33 = arith.constant 0 : index
    %31 = vector.load %arg3[%c0_30, %c2_31, %c0_32, %c0_33] : memref<3x3x8x128xbf16, #tpu.memory_space<vmem>>, vector<1x1x8x128xbf16>
    %32 = vector.shape_cast %31 : vector<1x1x8x128xbf16> to vector<8x128xbf16>
    %cst_34 = arith.constant dense<0.000000e+00> : vector<64x128xf32>
    %33 = tpu.matmul %30, %32, %cst_34 {dimension_numbers = #tpu.dot_dimension_numbers<[1], [0], [0], [1], [0, 0, 1, 1], [], []>} : vector<64x8xbf16>, vector<8x128xbf16>, vector<64x128xf32> -> vector<64x128xf32>
    %34 = arith.addf %29, %33 : vector<64x128xf32>
    %c0_35 = arith.constant 0 : index
    %c0_36 = arith.constant 0 : index
    %35 = vector.load %arg6[%c0_35, %c0_36] : memref<64x128xf32, #tpu.memory_space<vmem>>, vector<64x128xf32>
    tpu.vector_store %arg6[%c0_35, %c0_36], %34 {strides = array<i32>} : memref<64x128xf32, #tpu.memory_space<vmem>>, vector<64x128xf32>,
    %c1_i32 = arith.constant 1 : i32
    %36 = arith.addi %0, %c1_i32 : i32
    %c0_37 = arith.constant 0 : index
    %37 = arith.index_cast %36 : i32 to index
    %c0_38 = arith.constant 0 : index
    %c0_39 = arith.constant 0 : index
    %38 = vector.load %arg2[%c0_37, %37, %c0_38, %c0_39] : memref<1x6x18x8xbf16, #tpu.memory_space<vmem>>, vector<1x4x16x8xbf16>
    %39 = vector.shape_cast %38 : vector<1x4x16x8xbf16> to vector<4x16x8xbf16>
    %c0_40 = arith.constant 0 : index
    %c0_41 = arith.constant 0 : index
    %40 = vector.load %arg6[%c0_40, %c0_41] : memref<64x128xf32, #tpu.memory_space<vmem>>, vector<64x128xf32>
    %41 = vector.shape_cast %39 : vector<4x16x8xbf16> to vector<64x8xbf16>
    %c1_42 = arith.constant 1 : index
    %c0_43 = arith.constant 0 : index
    %c0_44 = arith.constant 0 : index
    %c0_45 = arith.constant 0 : index
    %42 = vector.load %arg3[%c1_42, %c0_43, %c0_44, %c0_45] : memref<3x3x8x128xbf16, #tpu.memory_space<vmem>>, vector<1x1x8x128xbf16>
    %43 = vector.shape_cast %42 : vector<1x1x8x128xbf16> to vector<8x128xbf16>
    %cst_46 = arith.constant dense<0.000000e+00> : vector<64x128xf32>
    %44 = tpu.matmul %41, %43, %cst_46 {dimension_numbers = #tpu.dot_dimension_numbers<[1], [0], [0], [1], [0, 0, 1, 1], [], []>} : vector<64x8xbf16>, vector<8x128xbf16>, vector<64x128xf32> -> vector<64x128xf32>
    %45 = arith.addf %40, %44 : vector<64x128xf32>
    %c0_47 = arith.constant 0 : index
    %c0_48 = arith.constant 0 : index
    %46 = vector.load %arg6[%c0_47, %c0_48] : memref<64x128xf32, #tpu.memory_space<vmem>>, vector<64x128xf32>
    tpu.vector_store %arg6[%c0_47, %c0_48], %45 {strides = array<i32>} : memref<64x128xf32, #tpu.memory_space<vmem>>, vector<64x128xf32>,
    %c1_i32_49 = arith.constant 1 : i32
    %47 = arith.addi %0, %c1_i32_49 : i32
    %c0_50 = arith.constant 0 : index
    %48 = arith.index_cast %47 : i32 to index
    %c1_51 = arith.constant 1 : index
    %c0_52 = arith.constant 0 : index
    %49 = vector.load %arg2[%c0_50, %48, %c1_51, %c0_52] : memref<1x6x18x8xbf16, #tpu.memory_space<vmem>>, vector<1x4x16x8xbf16>
    %50 = vector.shape_cast %49 : vector<1x4x16x8xbf16> to vector<4x16x8xbf16>
    %c0_53 = arith.constant 0 : index
    %c0_54 = arith.constant 0 : index
    %51 = vector.load %arg6[%c0_53, %c0_54] : memref<64x128xf32, #tpu.memory_space<vmem>>, vector<64x128xf32>
    %52 = vector.shape_cast %50 : vector<4x16x8xbf16> to vector<64x8xbf16>
    %c1_55 = arith.constant 1 : index
    %c1_56 = arith.constant 1 : index
    %c0_57 = arith.constant 0 : index
    %c0_58 = arith.constant 0 : index
    %53 = vector.load %arg3[%c1_55, %c1_56, %c0_57, %c0_58] : memref<3x3x8x128xbf16, #tpu.memory_space<vmem>>, vector<1x1x8x128xbf16>
    %54 = vector.shape_cast %53 : vector<1x1x8x128xbf16> to vector<8x128xbf16>
    %cst_59 = arith.constant dense<0.000000e+00> : vector<64x128xf32>
    %55 = tpu.matmul %52, %54, %cst_59 {dimension_numbers = #tpu.dot_dimension_numbers<[1], [0], [0], [1], [0, 0, 1, 1], [], []>} : vector<64x8xbf16>, vector<8x128xbf16>, vector<64x128xf32> -> vector<64x128xf32>
    %56 = arith.addf %51, %55 : vector<64x128xf32>
    %c0_60 = arith.constant 0 : index
    %c0_61 = arith.constant 0 : index
    %57 = vector.load %arg6[%c0_60, %c0_61] : memref<64x128xf32, #tpu.memory_space<vmem>>, vector<64x128xf32>
    tpu.vector_store %arg6[%c0_60, %c0_61], %56 {strides = array<i32>} : memref<64x128xf32, #tpu.memory_space<vmem>>, vector<64x128xf32>,
    %c1_i32_62 = arith.constant 1 : i32
    %58 = arith.addi %0, %c1_i32_62 : i32
    %c0_63 = arith.constant 0 : index
    %59 = arith.index_cast %58 : i32 to index
    %c2_64 = arith.constant 2 : index
    %c0_65 = arith.constant 0 : index
    %60 = vector.load %arg2[%c0_63, %59, %c2_64, %c0_65] : memref<1x6x18x8xbf16, #tpu.memory_space<vmem>>, vector<1x4x16x8xbf16>
    %61 = vector.shape_cast %60 : vector<1x4x16x8xbf16> to vector<4x16x8xbf16>
    %c0_66 = arith.constant 0 : index
    %c0_67 = arith.constant 0 : index
    %62 = vector.load %arg6[%c0_66, %c0_67] : memref<64x128xf32, #tpu.memory_space<vmem>>, vector<64x128xf32>
    %63 = vector.shape_cast %61 : vector<4x16x8xbf16> to vector<64x8xbf16>
    %c1_68 = arith.constant 1 : index
    %c2_69 = arith.constant 2 : index
    %c0_70 = arith.constant 0 : index
    %c0_71 = arith.constant 0 : index
    %64 = vector.load %arg3[%c1_68, %c2_69, %c0_70, %c0_71] : memref<3x3x8x128xbf16, #tpu.memory_space<vmem>>, vector<1x1x8x128xbf16>
    %65 = vector.shape_cast %64 : vector<1x1x8x128xbf16> to vector<8x128xbf16>
    %cst_72 = arith.constant dense<0.000000e+00> : vector<64x128xf32>
    %66 = tpu.matmul %63, %65, %cst_72 {dimension_numbers = #tpu.dot_dimension_numbers<[1], [0], [0], [1], [0, 0, 1, 1], [], []>} : vector<64x8xbf16>, vector<8x128xbf16>, vector<64x128xf32> -> vector<64x128xf32>
    %67 = arith.addf %62, %66 : vector<64x128xf32>
    %c0_73 = arith.constant 0 : index
    %c0_74 = arith.constant 0 : index
    %68 = vector.load %arg6[%c0_73, %c0_74] : memref<64x128xf32, #tpu.memory_space<vmem>>, vector<64x128xf32>
    tpu.vector_store %arg6[%c0_73, %c0_74], %67 {strides = array<i32>} : memref<64x128xf32, #tpu.memory_space<vmem>>, vector<64x128xf32>,
    %c2_i32 = arith.constant 2 : i32
    %69 = arith.addi %0, %c2_i32 : i32
    %c0_75 = arith.constant 0 : index
    %70 = arith.index_cast %69 : i32 to index
    %c0_76 = arith.constant 0 : index
    %c0_77 = arith.constant 0 : index
    %71 = vector.load %arg2[%c0_75, %70, %c0_76, %c0_77] : memref<1x6x18x8xbf16, #tpu.memory_space<vmem>>, vector<1x4x16x8xbf16>
    %72 = vector.shape_cast %71 : vector<1x4x16x8xbf16> to vector<4x16x8xbf16>
    %c0_78 = arith.constant 0 : index
    %c0_79 = arith.constant 0 : index
    %73 = vector.load %arg6[%c0_78, %c0_79] : memref<64x128xf32, #tpu.memory_space<vmem>>, vector<64x128xf32>
    %74 = vector.shape_cast %72 : vector<4x16x8xbf16> to vector<64x8xbf16>
    %c2_80 = arith.constant 2 : index
    %c0_81 = arith.constant 0 : index
    %c0_82 = arith.constant 0 : index
    %c0_83 = arith.constant 0 : index
    %75 = vector.load %arg3[%c2_80, %c0_81, %c0_82, %c0_83] : memref<3x3x8x128xbf16, #tpu.memory_space<vmem>>, vector<1x1x8x128xbf16>
    %76 = vector.shape_cast %75 : vector<1x1x8x128xbf16> to vector<8x128xbf16>
    %cst_84 = arith.constant dense<0.000000e+00> : vector<64x128xf32>
    %77 = tpu.matmul %74, %76, %cst_84 {dimension_numbers = #tpu.dot_dimension_numbers<[1], [0], [0], [1], [0, 0, 1, 1], [], []>} : vector<64x8xbf16>, vector<8x128xbf16>, vector<64x128xf32> -> vector<64x128xf32>
    %78 = arith.addf %73, %77 : vector<64x128xf32>
    %c0_85 = arith.constant 0 : index
    %c0_86 = arith.constant 0 : index
    %79 = vector.load %arg6[%c0_85, %c0_86] : memref<64x128xf32, #tpu.memory_space<vmem>>, vector<64x128xf32>
    tpu.vector_store %arg6[%c0_85, %c0_86], %78 {strides = array<i32>} : memref<64x128xf32, #tpu.memory_space<vmem>>, vector<64x128xf32>,
    %c2_i32_87 = arith.constant 2 : i32
    %80 = arith.addi %0, %c2_i32_87 : i32
    %c0_88 = arith.constant 0 : index
    %81 = arith.index_cast %80 : i32 to index
    %c1_89 = arith.constant 1 : index
    %c0_90 = arith.constant 0 : index
    %82 = vector.load %arg2[%c0_88, %81, %c1_89, %c0_90] : memref<1x6x18x8xbf16, #tpu.memory_space<vmem>>, vector<1x4x16x8xbf16>
    %83 = vector.shape_cast %82 : vector<1x4x16x8xbf16> to vector<4x16x8xbf16>
    %c0_91 = arith.constant 0 : index
    %c0_92 = arith.constant 0 : index
    %84 = vector.load %arg6[%c0_91, %c0_92] : memref<64x128xf32, #tpu.memory_space<vmem>>, vector<64x128xf32>
    %85 = vector.shape_cast %83 : vector<4x16x8xbf16> to vector<64x8xbf16>
    %c2_93 = arith.constant 2 : index
    %c1_94 = arith.constant 1 : index
    %c0_95 = arith.constant 0 : index
    %c0_96 = arith.constant 0 : index
    %86 = vector.load %arg3[%c2_93, %c1_94, %c0_95, %c0_96] : memref<3x3x8x128xbf16, #tpu.memory_space<vmem>>, vector<1x1x8x128xbf16>
    %87 = vector.shape_cast %86 : vector<1x1x8x128xbf16> to vector<8x128xbf16>
    %cst_97 = arith.constant dense<0.000000e+00> : vector<64x128xf32>
    %88 = tpu.matmul %85, %87, %cst_97 {dimension_numbers = #tpu.dot_dimension_numbers<[1], [0], [0], [1], [0, 0, 1, 1], [], []>} : vector<64x8xbf16>, vector<8x128xbf16>, vector<64x128xf32> -> vector<64x128xf32>
    %89 = arith.addf %84, %88 : vector<64x128xf32>
    %c0_98 = arith.constant 0 : index
    %c0_99 = arith.constant 0 : index
    %90 = vector.load %arg6[%c0_98, %c0_99] : memref<64x128xf32, #tpu.memory_space<vmem>>, vector<64x128xf32>
    tpu.vector_store %arg6[%c0_98, %c0_99], %89 {strides = array<i32>} : memref<64x128xf32, #tpu.memory_space<vmem>>, vector<64x128xf32>,
    %c2_i32_100 = arith.constant 2 : i32
    %91 = arith.addi %0, %c2_i32_100 : i32
    %c0_101 = arith.constant 0 : index
    %92 = arith.index_cast %91 : i32 to index
    %c2_102 = arith.constant 2 : index
    %c0_103 = arith.constant 0 : index
    %93 = vector.load %arg2[%c0_101, %92, %c2_102, %c0_103] : memref<1x6x18x8xbf16, #tpu.memory_space<vmem>>, vector<1x4x16x8xbf16>
    %94 = vector.shape_cast %93 : vector<1x4x16x8xbf16> to vector<4x16x8xbf16>
    %c0_104 = arith.constant 0 : index
    %c0_105 = arith.constant 0 : index
    %95 = vector.load %arg6[%c0_104, %c0_105] : memref<64x128xf32, #tpu.memory_space<vmem>>, vector<64x128xf32>
    %96 = vector.shape_cast %94 : vector<4x16x8xbf16> to vector<64x8xbf16>
    %c2_106 = arith.constant 2 : index
    %c2_107 = arith.constant 2 : index
    %c0_108 = arith.constant 0 : index
    %c0_109 = arith.constant 0 : index
    %97 = vector.load %arg3[%c2_106, %c2_107, %c0_108, %c0_109] : memref<3x3x8x128xbf16, #tpu.memory_space<vmem>>, vector<1x1x8x128xbf16>
    %98 = vector.shape_cast %97 : vector<1x1x8x128xbf16> to vector<8x128xbf16>
    %cst_110 = arith.constant dense<0.000000e+00> : vector<64x128xf32>
    %99 = tpu.matmul %96, %98, %cst_110 {dimension_numbers = #tpu.dot_dimension_numbers<[1], [0], [0], [1], [0, 0, 1, 1], [], []>} : vector<64x8xbf16>, vector<8x128xbf16>, vector<64x128xf32> -> vector<64x128xf32>
    %100 = arith.addf %95, %99 : vector<64x128xf32>
    %c0_111 = arith.constant 0 : index
    %c0_112 = arith.constant 0 : index
    %101 = vector.load %arg6[%c0_111, %c0_112] : memref<64x128xf32, #tpu.memory_space<vmem>>, vector<64x128xf32>
    tpu.vector_store %arg6[%c0_111, %c0_112], %100 {strides = array<i32>} : memref<64x128xf32, #tpu.memory_space<vmem>>, vector<64x128xf32>,
    %c0_113 = arith.constant 0 : index
    %c0_114 = arith.constant 0 : index
    %102 = vector.load %arg6[%c0_113, %c0_114] : memref<64x128xf32, #tpu.memory_space<vmem>>, vector<64x128xf32>
    %c0_115 = arith.constant 0 : index
    %c0_116 = arith.constant 0 : index
    %103 = vector.load %arg4[%c0_115, %c0_116] : memref<1x128xf32, #tpu.memory_space<vmem>>, vector<1x128xf32>
    %104 = vector.broadcast %103 : vector<1x128xf32> to vector<64x128xf32>
    %105 = arith.addf %102, %104 : vector<64x128xf32>
    %c0_117 = arith.constant 0 : index
    %c0_118 = arith.constant 0 : index
    %c0_119 = arith.constant 0 : index
    %106 = vector.load %arg5[%c0_117, %c0_118, %c0_119] : memref<1x64x128xf32, #tpu.memory_space<vmem>>, vector<1x64x128xf32>
    %107 = vector.shape_cast %106 : vector<1x64x128xf32> to vector<64x128xf32>
    %108 = vector.shape_cast %105 : vector<64x128xf32> to vector<1x64x128xf32>
    tpu.vector_store %arg5[%c0_117, %c0_118, %c0_119], %108 {strides = array<i32>} : memref<1x64x128xf32, #tpu.memory_space<vmem>>, vector<1x64x128xf32>,
    return
  }
  func.func @transform_0(%arg0: i32, %arg1: i32) -> (i32, i32, i32, i32) {
    %c0_i32 = arith.constant 0 : i32
    %c0_i32_0 = arith.constant 0 : i32
    %c0_i32_1 = arith.constant 0 : i32
    %c0_i32_2 = arith.constant 0 : i32
    return %arg0, %c0_i32, %c0_i32_0, %c0_i32_1 : i32, i32, i32, i32
  }
  func.func @transform_1(%arg0: i32, %arg1: i32) -> (i32, i32, i32, i32) {
    %c0_i32 = arith.constant 0 : i32
    %c0_i32_0 = arith.constant 0 : i32
    %c0_i32_1 = arith.constant 0 : i32
    %c0_i32_2 = arith.constant 0 : i32
    %c0_i32_3 = arith.constant 0 : i32
    return %c0_i32, %c0_i32_0, %c0_i32_1, %c0_i32_2 : i32, i32, i32, i32
  }
  func.func @transform_2(%arg0: i32, %arg1: i32) -> (i32, i32) {
    %c0_i32 = arith.constant 0 : i32
    %c0_i32_0 = arith.constant 0 : i32
    %c0_i32_1 = arith.constant 0 : i32
    return %c0_i32, %c0_i32_0 : i32, i32
  }
  func.func @transform_3(%arg0: i32, %arg1: i32) -> (i32, i32, i32) {
    %c1_i32 = arith.constant 1 : i32
    %0 = arith.muli %arg0, %c1_i32 : i32
    %1 = arith.addi %0, %arg1 : i32
    %c0_i32 = arith.constant 0 : i32
    %c0_i32_0 = arith.constant 0 : i32
    %c0_i32_1 = arith.constant 0 : i32
    return %1, %c0_i32, %c0_i32_0 : i32, i32, i32
  }
}

</mosaic_0001>

<llo_original>
// kernel: _forward.1
$region0: #{_forward.1}
  #allocation0 [shape = 'u32[]', space=smem, size = 0x4, offset = 0x4, fixed_abs, tag = 'smem constant byte address 0x4 - core index']
  #allocation1 [shape = 'u32[144,128]{1,0:T(1,128)}', space=vmem, size = 0x12000, scoped, tag = 'internal scratch']
  #allocation2 [shape = 'f32[64,128]{1,0:T(8,128)}', space=vmem, size = 0x8000, scoped, tag = 'scratch operand']
  %s0 = inlined_call_operand.vmem [shape: bf16[2,6,18,8], index: 0, kind: input, shape index: {}]
  %s1 = inlined_call_operand.vmem [shape: bf16[3,3,8,128], index: 1, kind: input, shape index: {}]
  %s2 = inlined_call_operand.vmem [shape: f32[1,128], index: 2, kind: input, shape index: {}]
  %s3 = inlined_call_operand.hbm [shape: f32[2,64,128], index: 3, kind: output, shape index: {}]
  %s4 = sld [smem:[#allocation0]]
  $region45: #{_forward.1} parent=0
    _
  %s6 = ssub.s32 1, %s4
  %s7 = scalar_select 0, %s6, %s4
  $region1: #{_forward.1} parent=0
    #allocation3 [shape = 'u8[65536]{0}', space=vmem, size = 0x10000, scoped, tag = 'output window, operand 0']
    #allocation4 [shape = 's32[2]{0}', space=sflag, size = 0x8, scoped, tag = 'scoped memory for _forward.1']
    %8 = vsyncpa [#allocation4], 0
    %s9 = scalar_lea.sflag [#allocation4], 1
    %10 = vsyncpa %s9, 0
    loop: start=0, step=1, limit=4
    $region2: #{_forward.1} parent=1 // loop_pre_header
      _
    $region3: #{_forward.1} parent=1 // loop_header
      %s12 = sphi 0, %s16
      %p13 = scmp.ge.s32.totalorder %s12, 4
      %s19 = sphi 0, %s31
      %s20 = sphi 0, %s27
      %s21 = sphi 0, %s19
      %s22 = sphi 0, %s20
      %s23 = sphi 0, %s21
      %s24 = sphi 0, %s22
      %s34 = sphi 0, %s36
      %s37 = sphi 0, %s34
      %s38 = sphi 0, %s37
      %s54 = sphi 0, %s38
      %s58 = sphi 0, %s58
      %s60 = sphi 0, %s58
      %s61 = sphi 0, %s60
      %s75 = sphi 0, %s61
      %s79 = sphi 0, %s79
      %s81 = sphi 0, %s79
      %s82 = sphi 0, %s81
      %s96 = sphi 0, %s82
      %s104 = sphi 0, %s106
      %s107 = sphi 0, %s104
      %s108 = sphi 0, %s107
      %s124 = sphi 0, %s108
    $region4: #{_forward.1} parent=1 // loop_header_branch
      %15 = sbr.rel (%p13) target = $region8
    $region5: #{_forward.1} parent=1 // loop_body
      %s17 = ssub.s32 %s12, 1
      %s18 = ssub.s32 %s12, 2
      %s25 = sadd.s32 1, %s20
      %p26 = scmp.ge.s32.totalorder %s25, 1
      %s27 = scalar_select %p26, 0, %s25
      %s28 = sadd.s32 1, %s19
      %s29 = scalar_select %p26, %s28, %s19
      %p30 = scmp.ge.s32.totalorder %s29, 2
      %s31 = scalar_select %p30, 0, %s29
      %s32 = ssub.s32 %s19, %s31
      %p33 = scmp.eq.s32.totalorder %s32, 0
      %s35 = sadd.s32 %s34, 1
      %s36 = scalar_select %p33, %s34, %s35
      %p39 = pneg %p33
      %p40 = scmp.eq.s32.totalorder %s12, 1
      %p41 = por %p39, %p40
      %p42 = scmp.ne.s32.totalorder %s34, %s37
      %p43 = scmp.eq.s32.totalorder %s12, 0
      %p44 = por %p42, %p43
      %p45 = scmp.ne.s32.totalorder %s34, %s37
      %p46 = scmp.eq.s32.totalorder %s17, 1
      %p47 = por %p45, %p46
      %p48 = scmp.ne.s32.totalorder %s37, %s38
      %p49 = scmp.eq.s32.totalorder %s17, 0
      %p50 = por %p48, %p49
      %p51 = scmp.ne.s32.totalorder %s37, %s38
      %p52 = scmp.eq.s32.totalorder %s18, 1
      %p53 = por %p51, %p52
      %p55 = scmp.ne.s32.totalorder %s38, %s54
      %p56 = scmp.eq.s32.totalorder %s18, 0
      %p57 = por %p55, %p56
      %s59 = sadd.s32 %s58, 1
      %p62 = scmp.eq.s32.totalorder %s12, 1
      %p63 = scmp.ne.s32.totalorder %s58, %s60
      %p64 = scmp.eq.s32.totalorder %s12, 0
      %p65 = por %p63, %p64
      %p66 = scmp.ne.s32.totalorder %s58, %s60
      %p67 = scmp.eq.s32.totalorder %s17, 1
      %p68 = por %p66, %p67
      %p69 = scmp.ne.s32.totalorder %s60, %s61
      %p70 = scmp.eq.s32.totalorder %s17, 0
      %p71 = por %p69, %p70
      %p72 = scmp.ne.s32.totalorder %s60, %s61
      %p73 = scmp.eq.s32.totalorder %s18, 1
      %p74 = por %p72, %p73
      %p76 = scmp.ne.s32.totalorder %s61, %s75
      %p77 = scmp.eq.s32.totalorder %s18, 0
      %p78 = por %p76, %p77
      %s80 = sadd.s32 %s79, 1
      %p83 = scmp.eq.s32.totalorder %s12, 1
      %p84 = scmp.ne.s32.totalorder %s79, %s81
      %p85 = scmp.eq.s32.totalorder %s12, 0
      %p86 = por %p84, %p85
      %p87 = scmp.ne.s32.totalorder %s79, %s81
      %p88 = scmp.eq.s32.totalorder %s17, 1
      %p89 = por %p87, %p88
      %p90 = scmp.ne.s32.totalorder %s81, %s82
      %p91 = scmp.eq.s32.totalorder %s17, 0
      %p92 = por %p90, %p91
      %p93 = scmp.ne.s32.totalorder %s81, %s82
      %p94 = scmp.eq.s32.totalorder %s18, 1
      %p95 = por %p93, %p94
      %p97 = scmp.ne.s32.totalorder %s82, %s96
      %p98 = scmp.eq.s32.totalorder %s18, 0
      %p99 = por %p97, %p98
      %s100 = sadd.s32 %s19, %s20
      %s101 = sadd.s32 %s31, %s27
      %s102 = ssub.s32 %s100, %s101
      %p103 = scmp.eq.s32.totalorder %s102, 0
      %s105 = sadd.s32 %s104, 1
      %s106 = scalar_select %p103, %s104, %s105
      %p109 = pneg %p103
      %p110 = scmp.eq.s32.totalorder %s12, 1
      %p111 = por %p109, %p110
      %p112 = scmp.ne.s32.totalorder %s104, %s107
      %p113 = scmp.eq.s32.totalorder %s12, 0
      %p114 = por %p112, %p113
      %p115 = scmp.ne.s32.totalorder %s104, %s107
      %p116 = scmp.eq.s32.totalorder %s17, 1
      %p117 = por %p115, %p116
      %p118 = scmp.ne.s32.totalorder %s107, %s108
      %p119 = scmp.eq.s32.totalorder %s17, 0
      %p120 = por %p118, %p119
      %p121 = scmp.ne.s32.totalorder %s107, %s108
      %p122 = scmp.eq.s32.totalorder %s18, 1
      %p123 = por %p121, %p122
      %p125 = scmp.ne.s32.totalorder %s108, %s124
      %p126 = scmp.eq.s32.totalorder %s18, 0
      %p127 = por %p125, %p126
      %p128 = scmp.le.s32.totalorder 1, %s12
      %p129 = scmp.lt.s32.totalorder %s12, 3
      %p130 = pnand %p128, %p129
      %p131 = pneg %p130
      // Predicated region
      $region9: #{_forward.1} parent=5 // pred_check
        _
      $region10: #{_forward.1} parent=5 // pred_check_branch
        %133 = sbr.rel (%p130) target = $region12
      $region11: #{_forward.1} parent=5 // pred_region
        %s134 = ssub.s32 %s12, 1
        // Predicated region
        $region13: #{_forward.1} parent=11 // pred_check
          %p135 = pneg %p71
        $region14: #{_forward.1} parent=11 // pred_check_branch
          %137 = sbr.rel (%p135) target = $region16
        $region15: #{_forward.1} parent=11 // pred_region
          _
        $region16: #{_forward.1} parent=11 // pred_fallthru
          _
        // Predicated region
        $region17: #{_forward.1} parent=11 // pred_check
          %p138 = pneg %p92
        $region18: #{_forward.1} parent=11 // pred_check_branch
          %140 = sbr.rel (%p138) target = $region20
        $region19: #{_forward.1} parent=11 // pred_region
          _
        $region20: #{_forward.1} parent=11 // pred_fallthru
          _
      $region12: #{_forward.1} parent=5 // pred_fallthru
        _
      %p141 = scmp.lt.s32.totalorder %s12, 2
      // Predicated region
      $region21: #{_forward.1} parent=5 // pred_check
        %p142 = pneg %p141
      $region22: #{_forward.1} parent=5 // pred_check_branch
        %144 = sbr.rel (%p142) target = $region24
      $region23: #{_forward.1} parent=5 // pred_region
        // Predicated region
        $region25: #{_forward.1} parent=23 // pred_check
          %p145 = pneg %p44
        $region26: #{_forward.1} parent=23 // pred_check_branch
          %147 = sbr.rel (%p145) target = $region28
        $region27: #{_forward.1} parent=23 // pred_region
          %p148 = scmp.lt.s32.totalorder %s19, 1
          %s149 = scalar_select %p148, %s19, 1
          %s150 = smul.addr %s149, 18
          %s151 = smul.addr %s150, 4
          %s152 = scalar_lea.vmem %s0, %s151
        $region28: #{_forward.1} parent=23 // pred_fallthru
          _
      $region24: #{_forward.1} parent=5 // pred_fallthru
        _
      %p153 = scmp.le.s32.totalorder 1, %s12
      %p154 = scmp.lt.s32.totalorder %s12, 3
      %p155 = pnand %p153, %p154
      %p156 = pneg %p155
      // Predicated region
      $region29: #{_forward.1} parent=5 // pred_check
        _
      $region30: #{_forward.1} parent=5 // pred_check_branch
        %158 = sbr.rel (%p155) target = $region32
      $region31: #{_forward.1} parent=5 // pred_region
        %s159 = ssub.s32 %s12, 1
        %p160 = scmp.lt.s32.totalorder %s21, 1
        %s161 = scalar_select %p160, %s21, 1
        %s162 = smul.addr %s161, 18
        %s163 = smul.addr %s162, 4
        %s164 = scalar_lea.vmem %s0, %s163
        %p165 = pneg %p50
        %p166 = pneg %p47
        %p167 = pneg %p71
        %p168 = pneg %p68
        %p169 = pneg %p92
        %p170 = pneg %p89
        %p171 = pneg %p120
        %p172 = pneg %p117
        %s173 = sand.u32 %s107, 1
        %s174 = scalar_lea.sflag [#allocation4], %s173
        %s175 = sand.u32 %s107, 1
        %s176 = smul.addr %s175, 64
        %s177 = scalar_lea.vmem [#allocation3], %s176
        %p178 = scmp.lt.s32.totalorder %s21, 1
        %s179 = scalar_select %p178, %s21, 1
        %s180 = smul.addr %s179, 18
        %s181 = smul.addr %s180, 4
        %s182 = scalar_lea.vmem %s0, %s181
        %s183 = sadd.s32 %s21, %s22
        %s185 = smul.u32 %s22, 4
        %186 = vst [vmem:[#allocation2] sm:$0xff] 0.0
        %187 = vst [vmem:[#allocation2 + $0x8] sm:$0xff] 0.0
        %188 = vst [vmem:[#allocation2 + $0x10] sm:$0xff] 0.0
        %189 = vst [vmem:[#allocation2 + $0x18] sm:$0xff] 0.0
        %190 = vst [vmem:[#allocation2 + $0x20] sm:$0xff] 0.0
        %191 = vst [vmem:[#allocation2 + $0x28] sm:$0xff] 0.0
        %192 = vst [vmem:[#allocation2 + $0x30] sm:$0xff] 0.0
        %193 = vst [vmem:[#allocation2 + $0x38] sm:$0xff] 0.0
        %s194 = smul.u32 %s185, 3
        %s195 = smul.addr %s194, 4
        %s196 = scalar_lea.vmem %s182, %s195
        %v197 = vld [vmem:[%s196] sm:$0xf]
        %v198 = vld [vmem:[%s196 + $0x4] sm:$0xf]
        %v199 = vld [vmem:[%s196 + $0xc] sm:$0xf]
        %v200 = vld [vmem:[%s196 + $0x10] sm:$0xf]
        %v201 = vld [vmem:[%s196 + $0x18] sm:$0xf]
        %v202 = vld [vmem:[%s196 + $0x1c] sm:$0xf]
        %v203 = vld [vmem:[%s196 + $0x24] sm:$0xf]
        %v204 = vld [vmem:[%s196 + $0x28] sm:$0xf]
        %v205 = vld [vmem:[#allocation2] sm:$0xff]
        %v206 = vld [vmem:[#allocation2 + $0x8] sm:$0xff]
        %v207 = vld [vmem:[#allocation2 + $0x10] sm:$0xff]
        %v208 = vld [vmem:[#allocation2 + $0x18] sm:$0xff]
        %v209 = vld [vmem:[#allocation2 + $0x20] sm:$0xff]
        %v210 = vld [vmem:[#allocation2 + $0x28] sm:$0xff]
        %v211 = vld [vmem:[#allocation2 + $0x30] sm:$0xff]
        %v212 = vld [vmem:[#allocation2 + $0x38] sm:$0xff]
        %v213 = vld [vmem:[%s1] sm:$0xf]
        %v222 = vunpack.c.l.b16 %v197
        %v223 = vunpack.c.l.b16 %v198
        %v224 = vunpack.c.l.b16 %v199
        %v225 = vunpack.c.l.b16 %v200
        %v226 = vunpack.c.l.b16 %v201
        %v227 = vunpack.c.l.b16 %v202
        %v228 = vunpack.c.l.b16 %v203
        %v229 = vunpack.c.l.b16 %v204
        %v230 = vpack.c.b16 %v223, %v222
        %v231 = vpack.c.b16 %v225, %v224
        %v232 = vpack.c.b16 %v227, %v226
        %v233 = vpack.c.b16 %v229, %v228
        %vm234 = vcmask 64512
        %v236 = vsel %vm234, %v230, 0
        %v239 = vsel %vm234, %v231, 0
        %v242 = vsel %vm234, %v232, 0
        %v245 = vsel %vm234, %v233, 0
        %vm247 = vcmask 1043456
        %v249 = vsel %vm247, %v213, 0
        %251 = vmatprep.subr.bf16.mxu0 0
        %252 = vmatpush1.bf16.msra.mxu0 0
        %253 = vmatprep.subr.bf16.mxu0 0
        %254 = vmatpush1.bf16.msra.mxu0 0
        %255 = vmatprep.subr.bf16.mxu0 0
        %256 = vmatpush1.bf16.msra.mxu0 0
        %257 = vmatprep.subr.bf16.mxu0 0
        %258 = vmatpush1.bf16.msra.mxu0 0
        %259 = vmatprep.subr.bf16.mxu0 0
        %260 = vmatpush1.bf16.msra.mxu0 0
        %261 = vmatprep.subr.bf16.mxu0 0
        %262 = vmatpush1.bf16.msra.mxu0 0
        %263 = vmatprep.subr.bf16.mxu0 0
        %264 = vmatpush1.bf16.msra.mxu0 0
        %265 = vmatprep.subr.bf16.mxu0 0
        %266 = vmatpush1.bf16.msra.mxu0 %v249
        %267 = vmatprep.subr.bf16.mxu0 0
        %268 = vmatpush2.bf16.msra.mxu0 0
        %269 = vmatprep.subr.bf16.mxu0 0
        %270 = vmatpush2.bf16.msra.mxu0 0
        %271 = vmatprep.subr.bf16.mxu0 0
        %272 = vmatpush2.bf16.msra.mxu0 0
        %273 = vmatprep.subr.bf16.mxu0 0
        %274 = vmatpush2.bf16.msra.mxu0 0
        %275 = vmatprep.subr.bf16.mxu0 0
        %276 = vmatpush2.bf16.msra.mxu0 0
        %277 = vmatprep.subr.bf16.mxu0 0
        %278 = vmatpush2.bf16.msra.mxu0 0
        %279 = vmatprep.subr.bf16.mxu0 0
        %280 = vmatpush2.bf16.msra.mxu0 0
        %281 = vmatprep.subr.bf16.mxu0 0
        %282 = vmatpush2.bf16.msra.mxu0 0
        %283 = vmatprep.mubr.bf16.mxu0 0
        %284 = vmatmul.mubr.bf16.gmra.mxu0 %v236
        %v285 = vpop.f32.mrf.mxu0
        %v286 = vadd.f32 0.0, %v285
        %v287 = vpop.f32.mrf.mxu0
        %v288 = vpop.f32.mrf.mxu0
        %v289 = vadd.f32 0.0, %v288
        %v290 = vpop.f32.mrf.mxu0
        %291 = vmatprep.mubr.bf16.mxu0 0
        %292 = vmatmul.mubr.bf16.gmra.mxu0 %v239
        %v293 = vpop.f32.mrf.mxu0
        %v294 = vadd.f32 0.0, %v293
        %v295 = vpop.f32.mrf.mxu0
        %v296 = vpop.f32.mrf.mxu0
        %v297 = vadd.f32 0.0, %v296
        %v298 = vpop.f32.mrf.mxu0
        %299 = vmatprep.mubr.bf16.mxu0 0
        %300 = vmatmul.mubr.bf16.gmra.mxu0 %v242
        %v301 = vpop.f32.mrf.mxu0
        %v302 = vadd.f32 0.0, %v301
        %v303 = vpop.f32.mrf.mxu0
        %v304 = vpop.f32.mrf.mxu0
        %v305 = vadd.f32 0.0, %v304
        %v306 = vpop.f32.mrf.mxu0
        %307 = vmatprep.mubr.bf16.mxu0 0
        %308 = vmatmul.mubr.bf16.gmra.mxu0 %v245
        %v309 = vpop.f32.mrf.mxu0
        %v310 = vadd.f32 0.0, %v309
        %v311 = vpop.f32.mrf.mxu0
        %v312 = vpop.f32.mrf.mxu0
        %v313 = vadd.f32 0.0, %v312
        %v314 = vpop.f32.mrf.mxu0
        %315 = vdwg.mxu0
        %v316 = vadd.f32 %v205, %v286
        %v317 = vadd.f32 %v206, %v289
        %v318 = vadd.f32 %v207, %v294
        %v319 = vadd.f32 %v208, %v297
        %v320 = vadd.f32 %v209, %v302
        %v321 = vadd.f32 %v210, %v305
        %v322 = vadd.f32 %v211, %v310
        %v323 = vadd.f32 %v212, %v313
        %324 = vst [vmem:[#allocation2] sm:$0xff] %v316
        %325 = vst [vmem:[#allocation2 + $0x8] sm:$0xff] %v317
        %326 = vst [vmem:[#allocation2 + $0x10] sm:$0xff] %v318
        %327 = vst [vmem:[#allocation2 + $0x18] sm:$0xff] %v319
        %328 = vst [vmem:[#allocation2 + $0x20] sm:$0xff] %v320
        %329 = vst [vmem:[#allocation2 + $0x28] sm:$0xff] %v321
        %330 = vst [vmem:[#allocation2 + $0x30] sm:$0xff] %v322
        %331 = vst [vmem:[#allocation2 + $0x38] sm:$0xff] %v323
        %v332 = vld [vmem:[%s196] sm:$0xf]
        %v333 = vld [vmem:[%s196 + $0x4] sm:$0xf]
        %v334 = vld [vmem:[%s196 + $0x8] sm:$0x1]
        %v335 = vld [vmem:[%s196 + $0xc] sm:$0xf]
        %v336 = vld [vmem:[%s196 + $0x10] sm:$0xf]
        %v337 = vld [vmem:[%s196 + $0x14] sm:$0x1]
        %v338 = vld [vmem:[%s196 + $0x18] sm:$0xf]
        %v339 = vld [vmem:[%s196 + $0x1c] sm:$0xf]
        %v340 = vld [vmem:[%s196 + $0x20] sm:$0x1]
        %v341 = vld [vmem:[%s196 + $0x24] sm:$0xf]
        %v342 = vld [vmem:[%s196 + $0x28] sm:$0xf]
        %v343 = vld [vmem:[%s196 + $0x2c] sm:$0x1]
        %v344 = vld [vmem:[#allocation2] sm:$0xff]
        %v345 = vld [vmem:[#allocation2 + $0x8] sm:$0xff]
        %v346 = vld [vmem:[#allocation2 + $0x10] sm:$0xff]
        %v347 = vld [vmem:[#allocation2 + $0x18] sm:$0xff]
        %v348 = vld [vmem:[#allocation2 + $0x20] sm:$0xff]
        %v349 = vld [vmem:[#allocation2 + $0x28] sm:$0xff]
        %v350 = vld [vmem:[#allocation2 + $0x30] sm:$0xff]
        %v351 = vld [vmem:[#allocation2 + $0x38] sm:$0xff]
        %vm352 = vsmask.f32 3328
        %vm353 = vsmask.f32 7440
        %vm354 = vmor %vm352, %vm353
        %v356 = vshrl.u32 %v332, 16
        %v358 = vrot.slane %v356, 4
        %v359 = vshll.u32 %v332, 16
        %v361 = vrot.slane %v359, 5
        %v362 = vor.u32 %v358, %v361
        %v363 = vrot.slane %v362, 4
        %v365 = vshll.u32 %v333, 16
        %v367 = vrot.slane %v365, 5
        %v368 = vsel %vm354, %v363, %v367
        %v369 = vshrl.u32 %v333, 16
        %v371 = vrot.slane %v369, 4
        %v372 = vor.u32 %v371, %v367
        %v373 = vrot.slane %v372, 4
        %v375 = vshll.u32 %v334, 16
        %v377 = vrot.slane %v375, 5
        %v378 = vsel %vm354, %v373, %v377
        %v380 = vshrl.u32 %v335, 16
        %v382 = vrot.slane %v380, 4
        %v383 = vshll.u32 %v335, 16
        %v385 = vrot.slane %v383, 5
        %v386 = vor.u32 %v382, %v385
        %v387 = vrot.slane %v386, 4
        %v389 = vshll.u32 %v336, 16
        %v391 = vrot.slane %v389, 5
        %v392 = vsel %vm354, %v387, %v391
        %v393 = vshrl.u32 %v336, 16
        %v395 = vrot.slane %v393, 4
        %v396 = vor.u32 %v395, %v391
        %v397 = vrot.slane %v396, 4
        %v399 = vshll.u32 %v337, 16
        %v401 = vrot.slane %v399, 5
        %v402 = vsel %vm354, %v397, %v401
        %v404 = vshrl.u32 %v338, 16
        %v406 = vrot.slane %v404, 4
        %v407 = vshll.u32 %v338, 16
        %v409 = vrot.slane %v407, 5
        %v410 = vor.u32 %v406, %v409
        %v411 = vrot.slane %v410, 4
        %v413 = vshll.u32 %v339, 16
        %v415 = vrot.slane %v413, 5
        %v416 = vsel %vm354, %v411, %v415
        %v417 = vshrl.u32 %v339, 16
        %v419 = vrot.slane %v417, 4
        %v420 = vor.u32 %v419, %v415
        %v421 = vrot.slane %v420, 4
        %v423 = vshll.u32 %v340, 16
        %v425 = vrot.slane %v423, 5
        %v426 = vsel %vm354, %v421, %v425
        %v428 = vshrl.u32 %v341, 16
        %v430 = vrot.slane %v428, 4
        %v431 = vshll.u32 %v341, 16
        %v433 = vrot.slane %v431, 5
        %v434 = vor.u32 %v430, %v433
        %v435 = vrot.slane %v434, 4
        %v437 = vshll.u32 %v342, 16
        %v439 = vrot.slane %v437, 5
        %v440 = vsel %vm354, %v435, %v439
        %v441 = vshrl.u32 %v342, 16
        %v443 = vrot.slane %v441, 4
        %v444 = vor.u32 %v443, %v439
        %v445 = vrot.slane %v444, 4
        %v447 = vshll.u32 %v343, 16
        %v449 = vrot.slane %v447, 5
        %v450 = vsel %vm354, %v445, %v449
        %s451 = scalar_lea.vmem %s1, 4
        %v452 = vld [vmem:[%s451] sm:$0xf]
        %v453 = vunpack.c.l.b16 %v368
        %v454 = vunpack.c.l.b16 %v378
        %v455 = vunpack.c.l.b16 %v392
        %v456 = vunpack.c.l.b16 %v402
        %v457 = vunpack.c.l.b16 %v416
        %v458 = vunpack.c.l.b16 %v426
        %v459 = vunpack.c.l.b16 %v440
        %v460 = vunpack.c.l.b16 %v450
        %v461 = vpack.c.b16 %v454, %v453
        %v462 = vpack.c.b16 %v456, %v455
        %v463 = vpack.c.b16 %v458, %v457
        %v464 = vpack.c.b16 %v460, %v459
        %v466 = vsel %vm234, %v461, 0
        %v469 = vsel %vm234, %v462, 0
        %v472 = vsel %vm234, %v463, 0
        %v475 = vsel %vm234, %v464, 0
        %v478 = vsel %vm247, %v452, 0
        %480 = vmatprep.subr.bf16.mxu0 0
        %481 = vmatpush1.bf16.msra.mxu0 0
        %482 = vmatprep.subr.bf16.mxu0 0
        %483 = vmatpush1.bf16.msra.mxu0 0
        %484 = vmatprep.subr.bf16.mxu0 0
        %485 = vmatpush1.bf16.msra.mxu0 0
        %486 = vmatprep.subr.bf16.mxu0 0
        %487 = vmatpush1.bf16.msra.mxu0 0
        %488 = vmatprep.subr.bf16.mxu0 0
        %489 = vmatpush1.bf16.msra.mxu0 0
        %490 = vmatprep.subr.bf16.mxu0 0
        %491 = vmatpush1.bf16.msra.mxu0 0
        %492 = vmatprep.subr.bf16.mxu0 0
        %493 = vmatpush1.bf16.msra.mxu0 0
        %494 = vmatprep.subr.bf16.mxu0 0
        %495 = vmatpush1.bf16.msra.mxu0 %v478
        %496 = vmatprep.subr.bf16.mxu0 0
        %497 = vmatpush2.bf16.msra.mxu0 0
        %498 = vmatprep.subr.bf16.mxu0 0
        %499 = vmatpush2.bf16.msra.mxu0 0
        %500 = vmatprep.subr.bf16.mxu0 0
        %501 = vmatpush2.bf16.msra.mxu0 0
        %502 = vmatprep.subr.bf16.mxu0 0
        %503 = vmatpush2.bf16.msra.mxu0 0
        %504 = vmatprep.subr.bf16.mxu0 0
        %505 = vmatpush2.bf16.msra.mxu0 0
        %506 = vmatprep.subr.bf16.mxu0 0
        %507 = vmatpush2.bf16.msra.mxu0 0
        %508 = vmatprep.subr.bf16.mxu0 0
        %509 = vmatpush2.bf16.msra.mxu0 0
        %510 = vmatprep.subr.bf16.mxu0 0
        %511 = vmatpush2.bf16.msra.mxu0 0
        %512 = vmatprep.mubr.bf16.mxu0 0
        %513 = vmatmul.mubr.bf16.gmra.mxu0 %v466
        %v514 = vpop.f32.mrf.mxu0
        %v515 = vadd.f32 0.0, %v514
        %v516 = vpop.f32.mrf.mxu0
        %v517 = vpop.f32.mrf.mxu0
        %v518 = vadd.f32 0.0, %v517
        %v519 = vpop.f32.mrf.mxu0
        %520 = vmatprep.mubr.bf16.mxu0 0
        %521 = vmatmul.mubr.bf16.gmra.mxu0 %v469
        %v522 = vpop.f32.mrf.mxu0
        %v523 = vadd.f32 0.0, %v522
        %v524 = vpop.f32.mrf.mxu0
        %v525 = vpop.f32.mrf.mxu0
        %v526 = vadd.f32 0.0, %v525
        %v527 = vpop.f32.mrf.mxu0
        %528 = vmatprep.mubr.bf16.mxu0 0
        %529 = vmatmul.mubr.bf16.gmra.mxu0 %v472
        %v530 = vpop.f32.mrf.mxu0
        %v531 = vadd.f32 0.0, %v530
        %v532 = vpop.f32.mrf.mxu0
        %v533 = vpop.f32.mrf.mxu0
        %v534 = vadd.f32 0.0, %v533
        %v535 = vpop.f32.mrf.mxu0
        %536 = vmatprep.mubr.bf16.mxu0 0
        %537 = vmatmul.mubr.bf16.gmra.mxu0 %v475
        %v538 = vpop.f32.mrf.mxu0
        %v539 = vadd.f32 0.0, %v538
        %v540 = vpop.f32.mrf.mxu0
        %v541 = vpop.f32.mrf.mxu0
        %v542 = vadd.f32 0.0, %v541
        %v543 = vpop.f32.mrf.mxu0
        %544 = vdwg.mxu0
        %v545 = vadd.f32 %v344, %v515
        %v546 = vadd.f32 %v345, %v518
        %v547 = vadd.f32 %v346, %v523
        %v548 = vadd.f32 %v347, %v526
        %v549 = vadd.f32 %v348, %v531
        %v550 = vadd.f32 %v349, %v534
        %v551 = vadd.f32 %v350, %v539
        %v552 = vadd.f32 %v351, %v542
        %553 = vst [vmem:[#allocation2] sm:$0xff] %v545
        %554 = vst [vmem:[#allocation2 + $0x8] sm:$0xff] %v546
        %555 = vst [vmem:[#allocation2 + $0x10] sm:$0xff] %v547
        %556 = vst [vmem:[#allocation2 + $0x18] sm:$0xff] %v548
        %557 = vst [vmem:[#allocation2 + $0x20] sm:$0xff] %v549
        %558 = vst [vmem:[#allocation2 + $0x28] sm:$0xff] %v550
        %559 = vst [vmem:[#allocation2 + $0x30] sm:$0xff] %v551
        %560 = vst [vmem:[#allocation2 + $0x38] sm:$0xff] %v552
        %v561 = vld [vmem:[%s196] sm:$0xe]
        %v562 = vld [vmem:[%s196 + $0x4] sm:$0xf]
        %v563 = vld [vmem:[%s196 + $0x8] sm:$0x1]
        %v564 = vld [vmem:[%s196 + $0xc] sm:$0xe]
        %v565 = vld [vmem:[%s196 + $0x10] sm:$0xf]
        %v566 = vld [vmem:[%s196 + $0x14] sm:$0x1]
        %v567 = vld [vmem:[%s196 + $0x18] sm:$0xe]
        %v568 = vld [vmem:[%s196 + $0x1c] sm:$0xf]
        %v569 = vld [vmem:[%s196 + $0x20] sm:$0x1]
        %v570 = vld [vmem:[%s196 + $0x24] sm:$0xe]
        %v571 = vld [vmem:[%s196 + $0x28] sm:$0xf]
        %v572 = vld [vmem:[%s196 + $0x2c] sm:$0x1]
        %v573 = vld [vmem:[#allocation2] sm:$0xff]
        %v574 = vld [vmem:[#allocation2 + $0x8] sm:$0xff]
        %v575 = vld [vmem:[#allocation2 + $0x10] sm:$0xff]
        %v576 = vld [vmem:[#allocation2 + $0x18] sm:$0xff]
        %v577 = vld [vmem:[#allocation2 + $0x20] sm:$0xff]
        %v578 = vld [vmem:[#allocation2 + $0x28] sm:$0xff]
        %v579 = vld [vmem:[#allocation2 + $0x30] sm:$0xff]
        %v580 = vld [vmem:[#allocation2 + $0x38] sm:$0xff]
        %vm593 = vcmask 1042432
        %vm594 = vcmask 1046532
        %vm595 = vmor %vm593, %vm594
        %v596 = vrot.slane %v561, 5
        %v597 = vrot.slane %v596, 4
        %v598 = vrot.slane %v562, 5
        %v599 = vsel %vm595, %v597, %v598
        %v600 = vrot.slane %v598, 4
        %v601 = vrot.slane %v563, 5
        %v602 = vsel %vm595, %v600, %v601
        %v603 = vrot.slane %v564, 5
        %v604 = vrot.slane %v603, 4
        %v605 = vrot.slane %v565, 5
        %v606 = vsel %vm595, %v604, %v605
        %v607 = vrot.slane %v605, 4
        %v608 = vrot.slane %v566, 5
        %v609 = vsel %vm595, %v607, %v608
        %v610 = vrot.slane %v567, 5
        %v611 = vrot.slane %v610, 4
        %v612 = vrot.slane %v568, 5
        %v613 = vsel %vm595, %v611, %v612
        %v614 = vrot.slane %v612, 4
        %v615 = vrot.slane %v569, 5
        %v616 = vsel %vm595, %v614, %v615
        %v617 = vrot.slane %v570, 5
        %v618 = vrot.slane %v617, 4
        %v619 = vrot.slane %v571, 5
        %v620 = vsel %vm595, %v618, %v619
        %v621 = vrot.slane %v619, 4
        %v622 = vrot.slane %v572, 5
        %v623 = vsel %vm595, %v621, %v622
        %s624 = scalar_lea.vmem %s1, 8
        %v625 = vld [vmem:[%s624] sm:$0xf]
        %v626 = vunpack.c.l.b16 %v599
        %v627 = vunpack.c.l.b16 %v602
        %v628 = vunpack.c.l.b16 %v606
        %v629 = vunpack.c.l.b16 %v609
        %v630 = vunpack.c.l.b16 %v613
        %v631 = vunpack.c.l.b16 %v616
        %v632 = vunpack.c.l.b16 %v620
        %v633 = vunpack.c.l.b16 %v623
        %v634 = vpack.c.b16 %v627, %v626
        %v635 = vpack.c.b16 %v629, %v628
        %v636 = vpack.c.b16 %v631, %v630
        %v637 = vpack.c.b16 %v633, %v632
        %v639 = vsel %vm234, %v634, 0
        %v642 = vsel %vm234, %v635, 0
        %v645 = vsel %vm234, %v636, 0
        %v648 = vsel %vm234, %v637, 0
        %v651 = vsel %vm247, %v625, 0
        %653 = vmatprep.subr.bf16.mxu0 0
        %654 = vmatpush1.bf16.msra.mxu0 0
        %655 = vmatprep.subr.bf16.mxu0 0
        %656 = vmatpush1.bf16.msra.mxu0 0
        %657 = vmatprep.subr.bf16.mxu0 0
        %658 = vmatpush1.bf16.msra.mxu0 0
        %659 = vmatprep.subr.bf16.mxu0 0
        %660 = vmatpush1.bf16.msra.mxu0 0
        %661 = vmatprep.subr.bf16.mxu0 0
        %662 = vmatpush1.bf16.msra.mxu0 0
        %663 = vmatprep.subr.bf16.mxu0 0
        %664 = vmatpush1.bf16.msra.mxu0 0
        %665 = vmatprep.subr.bf16.mxu0 0
        %666 = vmatpush1.bf16.msra.mxu0 0
        %667 = vmatprep.subr.bf16.mxu0 0
        %668 = vmatpush1.bf16.msra.mxu0 %v651
        %669 = vmatprep.subr.bf16.mxu0 0
        %670 = vmatpush2.bf16.msra.mxu0 0
        %671 = vmatprep.subr.bf16.mxu0 0
        %672 = vmatpush2.bf16.msra.mxu0 0
        %673 = vmatprep.subr.bf16.mxu0 0
        %674 = vmatpush2.bf16.msra.mxu0 0
        %675 = vmatprep.subr.bf16.mxu0 0
        %676 = vmatpush2.bf16.msra.mxu0 0
        %677 = vmatprep.subr.bf16.mxu0 0
        %678 = vmatpush2.bf16.msra.mxu0 0
        %679 = vmatprep.subr.bf16.mxu0 0
        %680 = vmatpush2.bf16.msra.mxu0 0
        %681 = vmatprep.subr.bf16.mxu0 0
        %682 = vmatpush2.bf16.msra.mxu0 0
        %683 = vmatprep.subr.bf16.mxu0 0
        %684 = vmatpush2.bf16.msra.mxu0 0
        %685 = vmatprep.mubr.bf16.mxu0 0
        %686 = vmatmul.mubr.bf16.gmra.mxu0 %v639
        %v687 = vpop.f32.mrf.mxu0
        %v688 = vadd.f32 0.0, %v687
        %v689 = vpop.f32.mrf.mxu0
        %v690 = vpop.f32.mrf.mxu0
        %v691 = vadd.f32 0.0, %v690
        %v692 = vpop.f32.mrf.mxu0
        %693 = vmatprep.mubr.bf16.mxu0 0
        %694 = vmatmul.mubr.bf16.gmra.mxu0 %v642
        %v695 = vpop.f32.mrf.mxu0
        %v696 = vadd.f32 0.0, %v695
        %v697 = vpop.f32.mrf.mxu0
        %v698 = vpop.f32.mrf.mxu0
        %v699 = vadd.f32 0.0, %v698
        %v700 = vpop.f32.mrf.mxu0
        %701 = vmatprep.mubr.bf16.mxu0 0
        %702 = vmatmul.mubr.bf16.gmra.mxu0 %v645
        %v703 = vpop.f32.mrf.mxu0
        %v704 = vadd.f32 0.0, %v703
        %v705 = vpop.f32.mrf.mxu0
        %v706 = vpop.f32.mrf.mxu0
        %v707 = vadd.f32 0.0, %v706
        %v708 = vpop.f32.mrf.mxu0
        %709 = vmatprep.mubr.bf16.mxu0 0
        %710 = vmatmul.mubr.bf16.gmra.mxu0 %v648
        %v711 = vpop.f32.mrf.mxu0
        %v712 = vadd.f32 0.0, %v711
        %v713 = vpop.f32.mrf.mxu0
        %v714 = vpop.f32.mrf.mxu0
        %v715 = vadd.f32 0.0, %v714
        %v716 = vpop.f32.mrf.mxu0
        %717 = vdwg.mxu0
        %v718 = vadd.f32 %v573, %v688
        %v719 = vadd.f32 %v574, %v691
        %v720 = vadd.f32 %v575, %v696
        %v721 = vadd.f32 %v576, %v699
        %v722 = vadd.f32 %v577, %v704
        %v723 = vadd.f32 %v578, %v707
        %v724 = vadd.f32 %v579, %v712
        %v725 = vadd.f32 %v580, %v715
        %726 = vst [vmem:[#allocation2] sm:$0xff] %v718
        %727 = vst [vmem:[#allocation2 + $0x8] sm:$0xff] %v719
        %728 = vst [vmem:[#allocation2 + $0x10] sm:$0xff] %v720
        %729 = vst [vmem:[#allocation2 + $0x18] sm:$0xff] %v721
        %730 = vst [vmem:[#allocation2 + $0x20] sm:$0xff] %v722
        %731 = vst [vmem:[#allocation2 + $0x28] sm:$0xff] %v723
        %732 = vst [vmem:[#allocation2 + $0x30] sm:$0xff] %v724
        %733 = vst [vmem:[#allocation2 + $0x38] sm:$0xff] %v725
        %s734 = sadd.s32 %s185, 1
        %s735 = smul.u32 %s734, 3
        %s736 = smul.addr %s735, 4
        %s737 = scalar_lea.vmem %s182, %s736
        %v738 = vld [vmem:[%s737] sm:$0xf]
        %v739 = vld [vmem:[%s737 + $0x4] sm:$0xf]
        %v740 = vld [vmem:[%s737 + $0xc] sm:$0xf]
        %v741 = vld [vmem:[%s737 + $0x10] sm:$0xf]
        %v742 = vld [vmem:[%s737 + $0x18] sm:$0xf]
        %v743 = vld [vmem:[%s737 + $0x1c] sm:$0xf]
        %v744 = vld [vmem:[%s737 + $0x24] sm:$0xf]
        %v745 = vld [vmem:[%s737 + $0x28] sm:$0xf]
        %v746 = vld [vmem:[#allocation2] sm:$0xff]
        %v747 = vld [vmem:[#allocation2 + $0x8] sm:$0xff]
        %v748 = vld [vmem:[#allocation2 + $0x10] sm:$0xff]
        %v749 = vld [vmem:[#allocation2 + $0x18] sm:$0xff]
        %v750 = vld [vmem:[#allocation2 + $0x20] sm:$0xff]
        %v751 = vld [vmem:[#allocation2 + $0x28] sm:$0xff]
        %v752 = vld [vmem:[#allocation2 + $0x30] sm:$0xff]
        %v753 = vld [vmem:[#allocation2 + $0x38] sm:$0xff]
        %s754 = scalar_lea.vmem %s1, 12
        %v755 = vld [vmem:[%s754] sm:$0xf]
        %v764 = vunpack.c.l.b16 %v738
        %v765 = vunpack.c.l.b16 %v739
        %v766 = vunpack.c.l.b16 %v740
        %v767 = vunpack.c.l.b16 %v741
        %v768 = vunpack.c.l.b16 %v742
        %v769 = vunpack.c.l.b16 %v743
        %v770 = vunpack.c.l.b16 %v744
        %v771 = vunpack.c.l.b16 %v745
        %v772 = vpack.c.b16 %v765, %v764
        %v773 = vpack.c.b16 %v767, %v766
        %v774 = vpack.c.b16 %v769, %v768
        %v775 = vpack.c.b16 %v771, %v770
        %v777 = vsel %vm234, %v772, 0
        %v780 = vsel %vm234, %v773, 0
        %v783 = vsel %vm234, %v774, 0
        %v786 = vsel %vm234, %v775, 0
        %v789 = vsel %vm247, %v755, 0
        %791 = vmatprep.subr.bf16.mxu0 0
        %792 = vmatpush1.bf16.msra.mxu0 0
        %793 = vmatprep.subr.bf16.mxu0 0
        %794 = vmatpush1.bf16.msra.mxu0 0
        %795 = vmatprep.subr.bf16.mxu0 0
        %796 = vmatpush1.bf16.msra.mxu0 0
        %797 = vmatprep.subr.bf16.mxu0 0
        %798 = vmatpush1.bf16.msra.mxu0 0
        %799 = vmatprep.subr.bf16.mxu0 0
        %800 = vmatpush1.bf16.msra.mxu0 0
        %801 = vmatprep.subr.bf16.mxu0 0
        %802 = vmatpush1.bf16.msra.mxu0 0
        %803 = vmatprep.subr.bf16.mxu0 0
        %804 = vmatpush1.bf16.msra.mxu0 0
        %805 = vmatprep.subr.bf16.mxu0 0
        %806 = vmatpush1.bf16.msra.mxu0 %v789
        %807 = vmatprep.subr.bf16.mxu0 0
        %808 = vmatpush2.bf16.msra.mxu0 0
        %809 = vmatprep.subr.bf16.mxu0 0
        %810 = vmatpush2.bf16.msra.mxu0 0
        %811 = vmatprep.subr.bf16.mxu0 0
        %812 = vmatpush2.bf16.msra.mxu0 0
        %813 = vmatprep.subr.bf16.mxu0 0
        %814 = vmatpush2.bf16.msra.mxu0 0
        %815 = vmatprep.subr.bf16.mxu0 0
        %816 = vmatpush2.bf16.msra.mxu0 0
        %817 = vmatprep.subr.bf16.mxu0 0
        %818 = vmatpush2.bf16.msra.mxu0 0
        %819 = vmatprep.subr.bf16.mxu0 0
        %820 = vmatpush2.bf16.msra.mxu0 0
        %821 = vmatprep.subr.bf16.mxu0 0
        %822 = vmatpush2.bf16.msra.mxu0 0
        %823 = vmatprep.mubr.bf16.mxu0 0
        %824 = vmatmul.mubr.bf16.gmra.mxu0 %v777
        %v825 = vpop.f32.mrf.mxu0
        %v826 = vadd.f32 0.0, %v825
        %v827 = vpop.f32.mrf.mxu0
        %v828 = vpop.f32.mrf.mxu0
        %v829 = vadd.f32 0.0, %v828
        %v830 = vpop.f32.mrf.mxu0
        %831 = vmatprep.mubr.bf16.mxu0 0
        %832 = vmatmul.mubr.bf16.gmra.mxu0 %v780
        %v833 = vpop.f32.mrf.mxu0
        %v834 = vadd.f32 0.0, %v833
        %v835 = vpop.f32.mrf.mxu0
        %v836 = vpop.f32.mrf.mxu0
        %v837 = vadd.f32 0.0, %v836
        %v838 = vpop.f32.mrf.mxu0
        %839 = vmatprep.mubr.bf16.mxu0 0
        %840 = vmatmul.mubr.bf16.gmra.mxu0 %v783
        %v841 = vpop.f32.mrf.mxu0
        %v842 = vadd.f32 0.0, %v841
        %v843 = vpop.f32.mrf.mxu0
        %v844 = vpop.f32.mrf.mxu0
        %v845 = vadd.f32 0.0, %v844
        %v846 = vpop.f32.mrf.mxu0
        %847 = vmatprep.mubr.bf16.mxu0 0
        %848 = vmatmul.mubr.bf16.gmra.mxu0 %v786
        %v849 = vpop.f32.mrf.mxu0
        %v850 = vadd.f32 0.0, %v849
        %v851 = vpop.f32.mrf.mxu0
        %v852 = vpop.f32.mrf.mxu0
        %v853 = vadd.f32 0.0, %v852
        %v854 = vpop.f32.mrf.mxu0
        %855 = vdwg.mxu0
        %v856 = vadd.f32 %v746, %v826
        %v857 = vadd.f32 %v747, %v829
        %v858 = vadd.f32 %v748, %v834
        %v859 = vadd.f32 %v749, %v837
        %v860 = vadd.f32 %v750, %v842
        %v861 = vadd.f32 %v751, %v845
        %v862 = vadd.f32 %v752, %v850
        %v863 = vadd.f32 %v753, %v853
        %864 = vst [vmem:[#allocation2] sm:$0xff] %v856
        %865 = vst [vmem:[#allocation2 + $0x8] sm:$0xff] %v857
        %866 = vst [vmem:[#allocation2 + $0x10] sm:$0xff] %v858
        %867 = vst [vmem:[#allocation2 + $0x18] sm:$0xff] %v859
        %868 = vst [vmem:[#allocation2 + $0x20] sm:$0xff] %v860
        %869 = vst [vmem:[#allocation2 + $0x28] sm:$0xff] %v861
        %870 = vst [vmem:[#allocation2 + $0x30] sm:$0xff] %v862
        %871 = vst [vmem:[#allocation2 + $0x38] sm:$0xff] %v863
        %v872 = vld [vmem:[%s737] sm:$0xf]
        %v873 = vld [vmem:[%s737 + $0x4] sm:$0xf]
        %v874 = vld [vmem:[%s737 + $0x8] sm:$0x1]
        %v875 = vld [vmem:[%s737 + $0xc] sm:$0xf]
        %v876 = vld [vmem:[%s737 + $0x10] sm:$0xf]
        %v877 = vld [vmem:[%s737 + $0x14] sm:$0x1]
        %v878 = vld [vmem:[%s737 + $0x18] sm:$0xf]
        %v879 = vld [vmem:[%s737 + $0x1c] sm:$0xf]
        %v880 = vld [vmem:[%s737 + $0x20] sm:$0x1]
        %v881 = vld [vmem:[%s737 + $0x24] sm:$0xf]
        %v882 = vld [vmem:[%s737 + $0x28] sm:$0xf]
        %v883 = vld [vmem:[%s737 + $0x2c] sm:$0x1]
        %v884 = vld [vmem:[#allocation2] sm:$0xff]
        %v885 = vld [vmem:[#allocation2 + $0x8] sm:$0xff]
        %v886 = vld [vmem:[#allocation2 + $0x10] sm:$0xff]
        %v887 = vld [vmem:[#allocation2 + $0x18] sm:$0xff]
        %v888 = vld [vmem:[#allocation2 + $0x20] sm:$0xff]
        %v889 = vld [vmem:[#allocation2 + $0x28] sm:$0xff]
        %v890 = vld [vmem:[#allocation2 + $0x30] sm:$0xff]
        %v891 = vld [vmem:[#allocation2 + $0x38] sm:$0xff]
        %v893 = vshrl.u32 %v872, 16
        %v895 = vrot.slane %v893, 4
        %v896 = vshll.u32 %v872, 16
        %v898 = vrot.slane %v896, 5
        %v899 = vor.u32 %v895, %v898
        %v900 = vrot.slane %v899, 4
        %v902 = vshll.u32 %v873, 16
        %v904 = vrot.slane %v902, 5
        %v905 = vsel %vm354, %v900, %v904
        %v906 = vshrl.u32 %v873, 16
        %v908 = vrot.slane %v906, 4
        %v909 = vor.u32 %v908, %v904
        %v910 = vrot.slane %v909, 4
        %v912 = vshll.u32 %v874, 16
        %v914 = vrot.slane %v912, 5
        %v915 = vsel %vm354, %v910, %v914
        %v917 = vshrl.u32 %v875, 16
        %v919 = vrot.slane %v917, 4
        %v920 = vshll.u32 %v875, 16
        %v922 = vrot.slane %v920, 5
        %v923 = vor.u32 %v919, %v922
        %v924 = vrot.slane %v923, 4
        %v926 = vshll.u32 %v876, 16
        %v928 = vrot.slane %v926, 5
        %v929 = vsel %vm354, %v924, %v928
        %v930 = vshrl.u32 %v876, 16
        %v932 = vrot.slane %v930, 4
        %v933 = vor.u32 %v932, %v928
        %v934 = vrot.slane %v933, 4
        %v936 = vshll.u32 %v877, 16
        %v938 = vrot.slane %v936, 5
        %v939 = vsel %vm354, %v934, %v938
        %v941 = vshrl.u32 %v878, 16
        %v943 = vrot.slane %v941, 4
        %v944 = vshll.u32 %v878, 16
        %v946 = vrot.slane %v944, 5
        %v947 = vor.u32 %v943, %v946
        %v948 = vrot.slane %v947, 4
        %v950 = vshll.u32 %v879, 16
        %v952 = vrot.slane %v950, 5
        %v953 = vsel %vm354, %v948, %v952
        %v954 = vshrl.u32 %v879, 16
        %v956 = vrot.slane %v954, 4
        %v957 = vor.u32 %v956, %v952
        %v958 = vrot.slane %v957, 4
        %v960 = vshll.u32 %v880, 16
        %v962 = vrot.slane %v960, 5
        %v963 = vsel %vm354, %v958, %v962
        %v965 = vshrl.u32 %v881, 16
        %v967 = vrot.slane %v965, 4
        %v968 = vshll.u32 %v881, 16
        %v970 = vrot.slane %v968, 5
        %v971 = vor.u32 %v967, %v970
        %v972 = vrot.slane %v971, 4
        %v974 = vshll.u32 %v882, 16
        %v976 = vrot.slane %v974, 5
        %v977 = vsel %vm354, %v972, %v976
        %v978 = vshrl.u32 %v882, 16
        %v980 = vrot.slane %v978, 4
        %v981 = vor.u32 %v980, %v976
        %v982 = vrot.slane %v981, 4
        %v984 = vshll.u32 %v883, 16
        %v986 = vrot.slane %v984, 5
        %v987 = vsel %vm354, %v982, %v986
        %s988 = scalar_lea.vmem %s1, 16
        %v989 = vld [vmem:[%s988] sm:$0xf]
        %v990 = vunpack.c.l.b16 %v905
        %v991 = vunpack.c.l.b16 %v915
        %v992 = vunpack.c.l.b16 %v929
        %v993 = vunpack.c.l.b16 %v939
        %v994 = vunpack.c.l.b16 %v953
        %v995 = vunpack.c.l.b16 %v963
        %v996 = vunpack.c.l.b16 %v977
        %v997 = vunpack.c.l.b16 %v987
        %v998 = vpack.c.b16 %v991, %v990
        %v999 = vpack.c.b16 %v993, %v992
        %v1000 = vpack.c.b16 %v995, %v994
        %v1001 = vpack.c.b16 %v997, %v996
        %v1003 = vsel %vm234, %v998, 0
        %v1006 = vsel %vm234, %v999, 0
        %v1009 = vsel %vm234, %v1000, 0
        %v1012 = vsel %vm234, %v1001, 0
        %v1015 = vsel %vm247, %v989, 0
        %1017 = vmatprep.subr.bf16.mxu0 0
        %1018 = vmatpush1.bf16.msra.mxu0 0
        %1019 = vmatprep.subr.bf16.mxu0 0
        %1020 = vmatpush1.bf16.msra.mxu0 0
        %1021 = vmatprep.subr.bf16.mxu0 0
        %1022 = vmatpush1.bf16.msra.mxu0 0
        %1023 = vmatprep.subr.bf16.mxu0 0
        %1024 = vmatpush1.bf16.msra.mxu0 0
        %1025 = vmatprep.subr.bf16.mxu0 0
        %1026 = vmatpush1.bf16.msra.mxu0 0
        %1027 = vmatprep.subr.bf16.mxu0 0
        %1028 = vmatpush1.bf16.msra.mxu0 0
        %1029 = vmatprep.subr.bf16.mxu0 0
        %1030 = vmatpush1.bf16.msra.mxu0 0
        %1031 = vmatprep.subr.bf16.mxu0 0
        %1032 = vmatpush1.bf16.msra.mxu0 %v1015
        %1033 = vmatprep.subr.bf16.mxu0 0
        %1034 = vmatpush2.bf16.msra.mxu0 0
        %1035 = vmatprep.subr.bf16.mxu0 0
        %1036 = vmatpush2.bf16.msra.mxu0 0
        %1037 = vmatprep.subr.bf16.mxu0 0
        %1038 = vmatpush2.bf16.msra.mxu0 0
        %1039 = vmatprep.subr.bf16.mxu0 0
        %1040 = vmatpush2.bf16.msra.mxu0 0
        %1041 = vmatprep.subr.bf16.mxu0 0
        %1042 = vmatpush2.bf16.msra.mxu0 0
        %1043 = vmatprep.subr.bf16.mxu0 0
        %1044 = vmatpush2.bf16.msra.mxu0 0
        %1045 = vmatprep.subr.bf16.mxu0 0
        %1046 = vmatpush2.bf16.msra.mxu0 0
        %1047 = vmatprep.subr.bf16.mxu0 0
        %1048 = vmatpush2.bf16.msra.mxu0 0
        %1049 = vmatprep.mubr.bf16.mxu0 0
        %1050 = vmatmul.mubr.bf16.gmra.mxu0 %v1003
        %v1051 = vpop.f32.mrf.mxu0
        %v1052 = vadd.f32 0.0, %v1051
        %v1053 = vpop.f32.mrf.mxu0
        %v1054 = vpop.f32.mrf.mxu0
        %v1055 = vadd.f32 0.0, %v1054
        %v1056 = vpop.f32.mrf.mxu0
        %1057 = vmatprep.mubr.bf16.mxu0 0
        %1058 = vmatmul.mubr.bf16.gmra.mxu0 %v1006
        %v1059 = vpop.f32.mrf.mxu0
        %v1060 = vadd.f32 0.0, %v1059
        %v1061 = vpop.f32.mrf.mxu0
        %v1062 = vpop.f32.mrf.mxu0
        %v1063 = vadd.f32 0.0, %v1062
        %v1064 = vpop.f32.mrf.mxu0
        %1065 = vmatprep.mubr.bf16.mxu0 0
        %1066 = vmatmul.mubr.bf16.gmra.mxu0 %v1009
        %v1067 = vpop.f32.mrf.mxu0
        %v1068 = vadd.f32 0.0, %v1067
        %v1069 = vpop.f32.mrf.mxu0
        %v1070 = vpop.f32.mrf.mxu0
        %v1071 = vadd.f32 0.0, %v1070
        %v1072 = vpop.f32.mrf.mxu0
        %1073 = vmatprep.mubr.bf16.mxu0 0
        %1074 = vmatmul.mubr.bf16.gmra.mxu0 %v1012
        %v1075 = vpop.f32.mrf.mxu0
        %v1076 = vadd.f32 0.0, %v1075
        %v1077 = vpop.f32.mrf.mxu0
        %v1078 = vpop.f32.mrf.mxu0
        %v1079 = vadd.f32 0.0, %v1078
        %v1080 = vpop.f32.mrf.mxu0
        %1081 = vdwg.mxu0
        %v1082 = vadd.f32 %v884, %v1052
        %v1083 = vadd.f32 %v885, %v1055
        %v1084 = vadd.f32 %v886, %v1060
        %v1085 = vadd.f32 %v887, %v1063
        %v1086 = vadd.f32 %v888, %v1068
        %v1087 = vadd.f32 %v889, %v1071
        %v1088 = vadd.f32 %v890, %v1076
        %v1089 = vadd.f32 %v891, %v1079
        %1090 = vst [vmem:[#allocation2] sm:$0xff] %v1082
        %1091 = vst [vmem:[#allocation2 + $0x8] sm:$0xff] %v1083
        %1092 = vst [vmem:[#allocation2 + $0x10] sm:$0xff] %v1084
        %1093 = vst [vmem:[#allocation2 + $0x18] sm:$0xff] %v1085
        %1094 = vst [vmem:[#allocation2 + $0x20] sm:$0xff] %v1086
        %1095 = vst [vmem:[#allocation2 + $0x28] sm:$0xff] %v1087
        %1096 = vst [vmem:[#allocation2 + $0x30] sm:$0xff] %v1088
        %1097 = vst [vmem:[#allocation2 + $0x38] sm:$0xff] %v1089
        %v1098 = vld [vmem:[%s737] sm:$0xe]
        %v1099 = vld [vmem:[%s737 + $0x4] sm:$0xf]
        %v1100 = vld [vmem:[%s737 + $0x8] sm:$0x1]
        %v1101 = vld [vmem:[%s737 + $0xc] sm:$0xe]
        %v1102 = vld [vmem:[%s737 + $0x10] sm:$0xf]
        %v1103 = vld [vmem:[%s737 + $0x14] sm:$0x1]
        %v1104 = vld [vmem:[%s737 + $0x18] sm:$0xe]
        %v1105 = vld [vmem:[%s737 + $0x1c] sm:$0xf]
        %v1106 = vld [vmem:[%s737 + $0x20] sm:$0x1]
        %v1107 = vld [vmem:[%s737 + $0x24] sm:$0xe]
        %v1108 = vld [vmem:[%s737 + $0x28] sm:$0xf]
        %v1109 = vld [vmem:[%s737 + $0x2c] sm:$0x1]
        %v1110 = vld [vmem:[#allocation2] sm:$0xff]
        %v1111 = vld [vmem:[#allocation2 + $0x8] sm:$0xff]
        %v1112 = vld [vmem:[#allocation2 + $0x10] sm:$0xff]
        %v1113 = vld [vmem:[#allocation2 + $0x18] sm:$0xff]
        %v1114 = vld [vmem:[#allocation2 + $0x20] sm:$0xff]
        %v1115 = vld [vmem:[#allocation2 + $0x28] sm:$0xff]
        %v1116 = vld [vmem:[#allocation2 + $0x30] sm:$0xff]
        %v1117 = vld [vmem:[#allocation2 + $0x38] sm:$0xff]
        %v1130 = vrot.slane %v1098, 5
        %v1131 = vrot.slane %v1130, 4
        %v1132 = vrot.slane %v1099, 5
        %v1133 = vsel %vm595, %v1131, %v1132
        %v1134 = vrot.slane %v1132, 4
        %v1135 = vrot.slane %v1100, 5
        %v1136 = vsel %vm595, %v1134, %v1135
        %v1137 = vrot.slane %v1101, 5
        %v1138 = vrot.slane %v1137, 4
        %v1139 = vrot.slane %v1102, 5
        %v1140 = vsel %vm595, %v1138, %v1139
        %v1141 = vrot.slane %v1139, 4
        %v1142 = vrot.slane %v1103, 5
        %v1143 = vsel %vm595, %v1141, %v1142
        %v1144 = vrot.slane %v1104, 5
        %v1145 = vrot.slane %v1144, 4
        %v1146 = vrot.slane %v1105, 5
        %v1147 = vsel %vm595, %v1145, %v1146
        %v1148 = vrot.slane %v1146, 4
        %v1149 = vrot.slane %v1106, 5
        %v1150 = vsel %vm595, %v1148, %v1149
        %v1151 = vrot.slane %v1107, 5
        %v1152 = vrot.slane %v1151, 4
        %v1153 = vrot.slane %v1108, 5
        %v1154 = vsel %vm595, %v1152, %v1153
        %v1155 = vrot.slane %v1153, 4
        %v1156 = vrot.slane %v1109, 5
        %v1157 = vsel %vm595, %v1155, %v1156
        %s1158 = scalar_lea.vmem %s1, 20
        %v1159 = vld [vmem:[%s1158] sm:$0xf]
        %v1160 = vunpack.c.l.b16 %v1133
        %v1161 = vunpack.c.l.b16 %v1136
        %v1162 = vunpack.c.l.b16 %v1140
        %v1163 = vunpack.c.l.b16 %v1143
        %v1164 = vunpack.c.l.b16 %v1147
        %v1165 = vunpack.c.l.b16 %v1150
        %v1166 = vunpack.c.l.b16 %v1154
        %v1167 = vunpack.c.l.b16 %v1157
        %v1168 = vpack.c.b16 %v1161, %v1160
        %v1169 = vpack.c.b16 %v1163, %v1162
        %v1170 = vpack.c.b16 %v1165, %v1164
        %v1171 = vpack.c.b16 %v1167, %v1166
        %v1173 = vsel %vm234, %v1168, 0
        %v1176 = vsel %vm234, %v1169, 0
        %v1179 = vsel %vm234, %v1170, 0
        %v1182 = vsel %vm234, %v1171, 0
        %v1185 = vsel %vm247, %v1159, 0
        %1187 = vmatprep.subr.bf16.mxu0 0
        %1188 = vmatpush1.bf16.msra.mxu0 0
        %1189 = vmatprep.subr.bf16.mxu0 0
        %1190 = vmatpush1.bf16.msra.mxu0 0
        %1191 = vmatprep.subr.bf16.mxu0 0
        %1192 = vmatpush1.bf16.msra.mxu0 0
        %1193 = vmatprep.subr.bf16.mxu0 0
        %1194 = vmatpush1.bf16.msra.mxu0 0
        %1195 = vmatprep.subr.bf16.mxu0 0
        %1196 = vmatpush1.bf16.msra.mxu0 0
        %1197 = vmatprep.subr.bf16.mxu0 0
        %1198 = vmatpush1.bf16.msra.mxu0 0
        %1199 = vmatprep.subr.bf16.mxu0 0
        %1200 = vmatpush1.bf16.msra.mxu0 0
        %1201 = vmatprep.subr.bf16.mxu0 0
        %1202 = vmatpush1.bf16.msra.mxu0 %v1185
        %1203 = vmatprep.subr.bf16.mxu0 0
        %1204 = vmatpush2.bf16.msra.mxu0 0
        %1205 = vmatprep.subr.bf16.mxu0 0
        %1206 = vmatpush2.bf16.msra.mxu0 0
        %1207 = vmatprep.subr.bf16.mxu0 0
        %1208 = vmatpush2.bf16.msra.mxu0 0
        %1209 = vmatprep.subr.bf16.mxu0 0
        %1210 = vmatpush2.bf16.msra.mxu0 0
        %1211 = vmatprep.subr.bf16.mxu0 0
        %1212 = vmatpush2.bf16.msra.mxu0 0
        %1213 = vmatprep.subr.bf16.mxu0 0
        %1214 = vmatpush2.bf16.msra.mxu0 0
        %1215 = vmatprep.subr.bf16.mxu0 0
        %1216 = vmatpush2.bf16.msra.mxu0 0
        %1217 = vmatprep.subr.bf16.mxu0 0
        %1218 = vmatpush2.bf16.msra.mxu0 0
        %1219 = vmatprep.mubr.bf16.mxu0 0
        %1220 = vmatmul.mubr.bf16.gmra.mxu0 %v1173
        %v1221 = vpop.f32.mrf.mxu0
        %v1222 = vadd.f32 0.0, %v1221
        %v1223 = vpop.f32.mrf.mxu0
        %v1224 = vpop.f32.mrf.mxu0
        %v1225 = vadd.f32 0.0, %v1224
        %v1226 = vpop.f32.mrf.mxu0
        %1227 = vmatprep.mubr.bf16.mxu0 0
        %1228 = vmatmul.mubr.bf16.gmra.mxu0 %v1176
        %v1229 = vpop.f32.mrf.mxu0
        %v1230 = vadd.f32 0.0, %v1229
        %v1231 = vpop.f32.mrf.mxu0
        %v1232 = vpop.f32.mrf.mxu0
        %v1233 = vadd.f32 0.0, %v1232
        %v1234 = vpop.f32.mrf.mxu0
        %1235 = vmatprep.mubr.bf16.mxu0 0
        %1236 = vmatmul.mubr.bf16.gmra.mxu0 %v1179
        %v1237 = vpop.f32.mrf.mxu0
        %v1238 = vadd.f32 0.0, %v1237
        %v1239 = vpop.f32.mrf.mxu0
        %v1240 = vpop.f32.mrf.mxu0
        %v1241 = vadd.f32 0.0, %v1240
        %v1242 = vpop.f32.mrf.mxu0
        %1243 = vmatprep.mubr.bf16.mxu0 0
        %1244 = vmatmul.mubr.bf16.gmra.mxu0 %v1182
        %v1245 = vpop.f32.mrf.mxu0
        %v1246 = vadd.f32 0.0, %v1245
        %v1247 = vpop.f32.mrf.mxu0
        %v1248 = vpop.f32.mrf.mxu0
        %v1249 = vadd.f32 0.0, %v1248
        %v1250 = vpop.f32.mrf.mxu0
        %1251 = vdwg.mxu0
        %v1252 = vadd.f32 %v1110, %v1222
        %v1253 = vadd.f32 %v1111, %v1225
        %v1254 = vadd.f32 %v1112, %v1230
        %v1255 = vadd.f32 %v1113, %v1233
        %v1256 = vadd.f32 %v1114, %v1238
        %v1257 = vadd.f32 %v1115, %v1241
        %v1258 = vadd.f32 %v1116, %v1246
        %v1259 = vadd.f32 %v1117, %v1249
        %1260 = vst [vmem:[#allocation2] sm:$0xff] %v1252
        %1261 = vst [vmem:[#allocation2 + $0x8] sm:$0xff] %v1253
        %1262 = vst [vmem:[#allocation2 + $0x10] sm:$0xff] %v1254
        %1263 = vst [vmem:[#allocation2 + $0x18] sm:$0xff] %v1255
        %1264 = vst [vmem:[#allocation2 + $0x20] sm:$0xff] %v1256
        %1265 = vst [vmem:[#allocation2 + $0x28] sm:$0xff] %v1257
        %1266 = vst [vmem:[#allocation2 + $0x30] sm:$0xff] %v1258
        %1267 = vst [vmem:[#allocation2 + $0x38] sm:$0xff] %v1259
        %s1268 = sadd.s32 %s185, 2
        %s1269 = smul.u32 %s1268, 3
        %s1270 = smul.addr %s1269, 4
        %s1271 = scalar_lea.vmem %s182, %s1270
        %v1272 = vld [vmem:[%s1271] sm:$0xf]
        %v1273 = vld [vmem:[%s1271 + $0x4] sm:$0xf]
        %v1274 = vld [vmem:[%s1271 + $0xc] sm:$0xf]
        %v1275 = vld [vmem:[%s1271 + $0x10] sm:$0xf]
        %v1276 = vld [vmem:[%s1271 + $0x18] sm:$0xf]
        %v1277 = vld [vmem:[%s1271 + $0x1c] sm:$0xf]
        %v1278 = vld [vmem:[%s1271 + $0x24] sm:$0xf]
        %v1279 = vld [vmem:[%s1271 + $0x28] sm:$0xf]
        %v1280 = vld [vmem:[#allocation2] sm:$0xff]
        %v1281 = vld [vmem:[#allocation2 + $0x8] sm:$0xff]
        %v1282 = vld [vmem:[#allocation2 + $0x10] sm:$0xff]
        %v1283 = vld [vmem:[#allocation2 + $0x18] sm:$0xff]
        %v1284 = vld [vmem:[#allocation2 + $0x20] sm:$0xff]
        %v1285 = vld [vmem:[#allocation2 + $0x28] sm:$0xff]
        %v1286 = vld [vmem:[#allocation2 + $0x30] sm:$0xff]
        %v1287 = vld [vmem:[#allocation2 + $0x38] sm:$0xff]
        %s1288 = scalar_lea.vmem %s1, 24
        %v1289 = vld [vmem:[%s1288] sm:$0xf]
        %v1298 = vunpack.c.l.b16 %v1272
        %v1299 = vunpack.c.l.b16 %v1273
        %v1300 = vunpack.c.l.b16 %v1274
        %v1301 = vunpack.c.l.b16 %v1275
        %v1302 = vunpack.c.l.b16 %v1276
        %v1303 = vunpack.c.l.b16 %v1277
        %v1304 = vunpack.c.l.b16 %v1278
        %v1305 = vunpack.c.l.b16 %v1279
        %v1306 = vpack.c.b16 %v1299, %v1298
        %v1307 = vpack.c.b16 %v1301, %v1300
        %v1308 = vpack.c.b16 %v1303, %v1302
        %v1309 = vpack.c.b16 %v1305, %v1304
        %v1311 = vsel %vm234, %v1306, 0
        %v1314 = vsel %vm234, %v1307, 0
        %v1317 = vsel %vm234, %v1308, 0
        %v1320 = vsel %vm234, %v1309, 0
        %v1323 = vsel %vm247, %v1289, 0
        %1325 = vmatprep.subr.bf16.mxu0 0
        %1326 = vmatpush1.bf16.msra.mxu0 0
        %1327 = vmatprep.subr.bf16.mxu0 0
        %1328 = vmatpush1.bf16.msra.mxu0 0
        %1329 = vmatprep.subr.bf16.mxu0 0
        %1330 = vmatpush1.bf16.msra.mxu0 0
        %1331 = vmatprep.subr.bf16.mxu0 0
        %1332 = vmatpush1.bf16.msra.mxu0 0
        %1333 = vmatprep.subr.bf16.mxu0 0
        %1334 = vmatpush1.bf16.msra.mxu0 0
        %1335 = vmatprep.subr.bf16.mxu0 0
        %1336 = vmatpush1.bf16.msra.mxu0 0
        %1337 = vmatprep.subr.bf16.mxu0 0
        %1338 = vmatpush1.bf16.msra.mxu0 0
        %1339 = vmatprep.subr.bf16.mxu0 0
        %1340 = vmatpush1.bf16.msra.mxu0 %v1323
        %1341 = vmatprep.subr.bf16.mxu0 0
        %1342 = vmatpush2.bf16.msra.mxu0 0
        %1343 = vmatprep.subr.bf16.mxu0 0
        %1344 = vmatpush2.bf16.msra.mxu0 0
        %1345 = vmatprep.subr.bf16.mxu0 0
        %1346 = vmatpush2.bf16.msra.mxu0 0
        %1347 = vmatprep.subr.bf16.mxu0 0
        %1348 = vmatpush2.bf16.msra.mxu0 0
        %1349 = vmatprep.subr.bf16.mxu0 0
        %1350 = vmatpush2.bf16.msra.mxu0 0
        %1351 = vmatprep.subr.bf16.mxu0 0
        %1352 = vmatpush2.bf16.msra.mxu0 0
        %1353 = vmatprep.subr.bf16.mxu0 0
        %1354 = vmatpush2.bf16.msra.mxu0 0
        %1355 = vmatprep.subr.bf16.mxu0 0
        %1356 = vmatpush2.bf16.msra.mxu0 0
        %1357 = vmatprep.mubr.bf16.mxu0 0
        %1358 = vmatmul.mubr.bf16.gmra.mxu0 %v1311
        %v1359 = vpop.f32.mrf.mxu0
        %v1360 = vadd.f32 0.0, %v1359
        %v1361 = vpop.f32.mrf.mxu0
        %v1362 = vpop.f32.mrf.mxu0
        %v1363 = vadd.f32 0.0, %v1362
        %v1364 = vpop.f32.mrf.mxu0
        %1365 = vmatprep.mubr.bf16.mxu0 0
        %1366 = vmatmul.mubr.bf16.gmra.mxu0 %v1314
        %v1367 = vpop.f32.mrf.mxu0
        %v1368 = vadd.f32 0.0, %v1367
        %v1369 = vpop.f32.mrf.mxu0
        %v1370 = vpop.f32.mrf.mxu0
        %v1371 = vadd.f32 0.0, %v1370
        %v1372 = vpop.f32.mrf.mxu0
        %1373 = vmatprep.mubr.bf16.mxu0 0
        %1374 = vmatmul.mubr.bf16.gmra.mxu0 %v1317
        %v1375 = vpop.f32.mrf.mxu0
        %v1376 = vadd.f32 0.0, %v1375
        %v1377 = vpop.f32.mrf.mxu0
        %v1378 = vpop.f32.mrf.mxu0
        %v1379 = vadd.f32 0.0, %v1378
        %v1380 = vpop.f32.mrf.mxu0
        %1381 = vmatprep.mubr.bf16.mxu0 0
        %1382 = vmatmul.mubr.bf16.gmra.mxu0 %v1320
        %v1383 = vpop.f32.mrf.mxu0
        %v1384 = vadd.f32 0.0, %v1383
        %v1385 = vpop.f32.mrf.mxu0
        %v1386 = vpop.f32.mrf.mxu0
        %v1387 = vadd.f32 0.0, %v1386
        %v1388 = vpop.f32.mrf.mxu0
        %1389 = vdwg.mxu0
        %v1390 = vadd.f32 %v1280, %v1360
        %v1391 = vadd.f32 %v1281, %v1363
        %v1392 = vadd.f32 %v1282, %v1368
        %v1393 = vadd.f32 %v1283, %v1371
        %v1394 = vadd.f32 %v1284, %v1376
        %v1395 = vadd.f32 %v1285, %v1379
        %v1396 = vadd.f32 %v1286, %v1384
        %v1397 = vadd.f32 %v1287, %v1387
        %1398 = vst [vmem:[#allocation2] sm:$0xff] %v1390
        %1399 = vst [vmem:[#allocation2 + $0x8] sm:$0xff] %v1391
        %1400 = vst [vmem:[#allocation2 + $0x10] sm:$0xff] %v1392
        %1401 = vst [vmem:[#allocation2 + $0x18] sm:$0xff] %v1393
        %1402 = vst [vmem:[#allocation2 + $0x20] sm:$0xff] %v1394
        %1403 = vst [vmem:[#allocation2 + $0x28] sm:$0xff] %v1395
        %1404 = vst [vmem:[#allocation2 + $0x30] sm:$0xff] %v1396
        %1405 = vst [vmem:[#allocation2 + $0x38] sm:$0xff] %v1397
        %v1406 = vld [vmem:[%s1271] sm:$0xf]
        %v1407 = vld [vmem:[%s1271 + $0x4] sm:$0xf]
        %v1408 = vld [vmem:[%s1271 + $0x8] sm:$0x1]
        %v1409 = vld [vmem:[%s1271 + $0xc] sm:$0xf]
        %v1410 = vld [vmem:[%s1271 + $0x10] sm:$0xf]
        %v1411 = vld [vmem:[%s1271 + $0x14] sm:$0x1]
        %v1412 = vld [vmem:[%s1271 + $0x18] sm:$0xf]
        %v1413 = vld [vmem:[%s1271 + $0x1c] sm:$0xf]
        %v1414 = vld [vmem:[%s1271 + $0x20] sm:$0x1]
        %v1415 = vld [vmem:[%s1271 + $0x24] sm:$0xf]
        %v1416 = vld [vmem:[%s1271 + $0x28] sm:$0xf]
        %v1417 = vld [vmem:[%s1271 + $0x2c] sm:$0x1]
        %v1418 = vld [vmem:[#allocation2] sm:$0xff]
        %v1419 = vld [vmem:[#allocation2 + $0x8] sm:$0xff]
        %v1420 = vld [vmem:[#allocation2 + $0x10] sm:$0xff]
        %v1421 = vld [vmem:[#allocation2 + $0x18] sm:$0xff]
        %v1422 = vld [vmem:[#allocation2 + $0x20] sm:$0xff]
        %v1423 = vld [vmem:[#allocation2 + $0x28] sm:$0xff]
        %v1424 = vld [vmem:[#allocation2 + $0x30] sm:$0xff]
        %v1425 = vld [vmem:[#allocation2 + $0x38] sm:$0xff]
        %v1427 = vshrl.u32 %v1406, 16
        %v1429 = vrot.slane %v1427, 4
        %v1430 = vshll.u32 %v1406, 16
        %v1432 = vrot.slane %v1430, 5
        %v1433 = vor.u32 %v1429, %v1432
        %v1434 = vrot.slane %v1433, 4
        %v1436 = vshll.u32 %v1407, 16
        %v1438 = vrot.slane %v1436, 5
        %v1439 = vsel %vm354, %v1434, %v1438
        %v1440 = vshrl.u32 %v1407, 16
        %v1442 = vrot.slane %v1440, 4
        %v1443 = vor.u32 %v1442, %v1438
        %v1444 = vrot.slane %v1443, 4
        %v1446 = vshll.u32 %v1408, 16
        %v1448 = vrot.slane %v1446, 5
        %v1449 = vsel %vm354, %v1444, %v1448
        %v1451 = vshrl.u32 %v1409, 16
        %v1453 = vrot.slane %v1451, 4
        %v1454 = vshll.u32 %v1409, 16
        %v1456 = vrot.slane %v1454, 5
        %v1457 = vor.u32 %v1453, %v1456
        %v1458 = vrot.slane %v1457, 4
        %v1460 = vshll.u32 %v1410, 16
        %v1462 = vrot.slane %v1460, 5
        %v1463 = vsel %vm354, %v1458, %v1462
        %v1464 = vshrl.u32 %v1410, 16
        %v1466 = vrot.slane %v1464, 4
        %v1467 = vor.u32 %v1466, %v1462
        %v1468 = vrot.slane %v1467, 4
        %v1470 = vshll.u32 %v1411, 16
        %v1472 = vrot.slane %v1470, 5
        %v1473 = vsel %vm354, %v1468, %v1472
        %v1475 = vshrl.u32 %v1412, 16
        %v1477 = vrot.slane %v1475, 4
        %v1478 = vshll.u32 %v1412, 16
        %v1480 = vrot.slane %v1478, 5
        %v1481 = vor.u32 %v1477, %v1480
        %v1482 = vrot.slane %v1481, 4
        %v1484 = vshll.u32 %v1413, 16
        %v1486 = vrot.slane %v1484, 5
        %v1487 = vsel %vm354, %v1482, %v1486
        %v1488 = vshrl.u32 %v1413, 16
        %v1490 = vrot.slane %v1488, 4
        %v1491 = vor.u32 %v1490, %v1486
        %v1492 = vrot.slane %v1491, 4
        %v1494 = vshll.u32 %v1414, 16
        %v1496 = vrot.slane %v1494, 5
        %v1497 = vsel %vm354, %v1492, %v1496
        %v1499 = vshrl.u32 %v1415, 16
        %v1501 = vrot.slane %v1499, 4
        %v1502 = vshll.u32 %v1415, 16
        %v1504 = vrot.slane %v1502, 5
        %v1505 = vor.u32 %v1501, %v1504
        %v1506 = vrot.slane %v1505, 4
        %v1508 = vshll.u32 %v1416, 16
        %v1510 = vrot.slane %v1508, 5
        %v1511 = vsel %vm354, %v1506, %v1510
        %v1512 = vshrl.u32 %v1416, 16
        %v1514 = vrot.slane %v1512, 4
        %v1515 = vor.u32 %v1514, %v1510
        %v1516 = vrot.slane %v1515, 4
        %v1518 = vshll.u32 %v1417, 16
        %v1520 = vrot.slane %v1518, 5
        %v1521 = vsel %vm354, %v1516, %v1520
        %s1522 = scalar_lea.vmem %s1, 28
        %v1523 = vld [vmem:[%s1522] sm:$0xf]
        %v1524 = vunpack.c.l.b16 %v1439
        %v1525 = vunpack.c.l.b16 %v1449
        %v1526 = vunpack.c.l.b16 %v1463
        %v1527 = vunpack.c.l.b16 %v1473
        %v1528 = vunpack.c.l.b16 %v1487
        %v1529 = vunpack.c.l.b16 %v1497
        %v1530 = vunpack.c.l.b16 %v1511
        %v1531 = vunpack.c.l.b16 %v1521
        %v1532 = vpack.c.b16 %v1525, %v1524
        %v1533 = vpack.c.b16 %v1527, %v1526
        %v1534 = vpack.c.b16 %v1529, %v1528
        %v1535 = vpack.c.b16 %v1531, %v1530
        %v1537 = vsel %vm234, %v1532, 0
        %v1540 = vsel %vm234, %v1533, 0
        %v1543 = vsel %vm234, %v1534, 0
        %v1546 = vsel %vm234, %v1535, 0
        %v1549 = vsel %vm247, %v1523, 0
        %1551 = vmatprep.subr.bf16.mxu0 0
        %1552 = vmatpush1.bf16.msra.mxu0 0
        %1553 = vmatprep.subr.bf16.mxu0 0
        %1554 = vmatpush1.bf16.msra.mxu0 0
        %1555 = vmatprep.subr.bf16.mxu0 0
        %1556 = vmatpush1.bf16.msra.mxu0 0
        %1557 = vmatprep.subr.bf16.mxu0 0
        %1558 = vmatpush1.bf16.msra.mxu0 0
        %1559 = vmatprep.subr.bf16.mxu0 0
        %1560 = vmatpush1.bf16.msra.mxu0 0
        %1561 = vmatprep.subr.bf16.mxu0 0
        %1562 = vmatpush1.bf16.msra.mxu0 0
        %1563 = vmatprep.subr.bf16.mxu0 0
        %1564 = vmatpush1.bf16.msra.mxu0 0
        %1565 = vmatprep.subr.bf16.mxu0 0
        %1566 = vmatpush1.bf16.msra.mxu0 %v1549
        %1567 = vmatprep.subr.bf16.mxu0 0
        %1568 = vmatpush2.bf16.msra.mxu0 0
        %1569 = vmatprep.subr.bf16.mxu0 0
        %1570 = vmatpush2.bf16.msra.mxu0 0
        %1571 = vmatprep.subr.bf16.mxu0 0
        %1572 = vmatpush2.bf16.msra.mxu0 0
        %1573 = vmatprep.subr.bf16.mxu0 0
        %1574 = vmatpush2.bf16.msra.mxu0 0
        %1575 = vmatprep.subr.bf16.mxu0 0
        %1576 = vmatpush2.bf16.msra.mxu0 0
        %1577 = vmatprep.subr.bf16.mxu0 0
        %1578 = vmatpush2.bf16.msra.mxu0 0
        %1579 = vmatprep.subr.bf16.mxu0 0
        %1580 = vmatpush2.bf16.msra.mxu0 0
        %1581 = vmatprep.subr.bf16.mxu0 0
        %1582 = vmatpush2.bf16.msra.mxu0 0
        %1583 = vmatprep.mubr.bf16.mxu0 0
        %1584 = vmatmul.mubr.bf16.gmra.mxu0 %v1537
        %v1585 = vpop.f32.mrf.mxu0
        %v1586 = vadd.f32 0.0, %v1585
        %v1587 = vpop.f32.mrf.mxu0
        %v1588 = vpop.f32.mrf.mxu0
        %v1589 = vadd.f32 0.0, %v1588
        %v1590 = vpop.f32.mrf.mxu0
        %1591 = vmatprep.mubr.bf16.mxu0 0
        %1592 = vmatmul.mubr.bf16.gmra.mxu0 %v1540
        %v1593 = vpop.f32.mrf.mxu0
        %v1594 = vadd.f32 0.0, %v1593
        %v1595 = vpop.f32.mrf.mxu0
        %v1596 = vpop.f32.mrf.mxu0
        %v1597 = vadd.f32 0.0, %v1596
        %v1598 = vpop.f32.mrf.mxu0
        %1599 = vmatprep.mubr.bf16.mxu0 0
        %1600 = vmatmul.mubr.bf16.gmra.mxu0 %v1543
        %v1601 = vpop.f32.mrf.mxu0
        %v1602 = vadd.f32 0.0, %v1601
        %v1603 = vpop.f32.mrf.mxu0
        %v1604 = vpop.f32.mrf.mxu0
        %v1605 = vadd.f32 0.0, %v1604
        %v1606 = vpop.f32.mrf.mxu0
        %1607 = vmatprep.mubr.bf16.mxu0 0
        %1608 = vmatmul.mubr.bf16.gmra.mxu0 %v1546
        %v1609 = vpop.f32.mrf.mxu0
        %v1610 = vadd.f32 0.0, %v1609
        %v1611 = vpop.f32.mrf.mxu0
        %v1612 = vpop.f32.mrf.mxu0
        %v1613 = vadd.f32 0.0, %v1612
        %v1614 = vpop.f32.mrf.mxu0
        %1615 = vdwg.mxu0
        %v1616 = vadd.f32 %v1418, %v1586
        %v1617 = vadd.f32 %v1419, %v1589
        %v1618 = vadd.f32 %v1420, %v1594
        %v1619 = vadd.f32 %v1421, %v1597
        %v1620 = vadd.f32 %v1422, %v1602
        %v1621 = vadd.f32 %v1423, %v1605
        %v1622 = vadd.f32 %v1424, %v1610
        %v1623 = vadd.f32 %v1425, %v1613
        %1624 = vst [vmem:[#allocation2] sm:$0xff] %v1616
        %1625 = vst [vmem:[#allocation2 + $0x8] sm:$0xff] %v1617
        %1626 = vst [vmem:[#allocation2 + $0x10] sm:$0xff] %v1618
        %1627 = vst [vmem:[#allocation2 + $0x18] sm:$0xff] %v1619
        %1628 = vst [vmem:[#allocation2 + $0x20] sm:$0xff] %v1620
        %1629 = vst [vmem:[#allocation2 + $0x28] sm:$0xff] %v1621
        %1630 = vst [vmem:[#allocation2 + $0x30] sm:$0xff] %v1622
        %1631 = vst [vmem:[#allocation2 + $0x38] sm:$0xff] %v1623
        %v1632 = vld [vmem:[%s1271] sm:$0xe]
        %v1633 = vld [vmem:[%s1271 + $0x4] sm:$0xf]
        %v1634 = vld [vmem:[%s1271 + $0x8] sm:$0x1]
        %v1635 = vld [vmem:[%s1271 + $0xc] sm:$0xe]
        %v1636 = vld [vmem:[%s1271 + $0x10] sm:$0xf]
        %v1637 = vld [vmem:[%s1271 + $0x14] sm:$0x1]
        %v1638 = vld [vmem:[%s1271 + $0x18] sm:$0xe]
        %v1639 = vld [vmem:[%s1271 + $0x1c] sm:$0xf]
        %v1640 = vld [vmem:[%s1271 + $0x20] sm:$0x1]
        %v1641 = vld [vmem:[%s1271 + $0x24] sm:$0xe]
        %v1642 = vld [vmem:[%s1271 + $0x28] sm:$0xf]
        %v1643 = vld [vmem:[%s1271 + $0x2c] sm:$0x1]
        %v1644 = vld [vmem:[#allocation2] sm:$0xff]
        %v1645 = vld [vmem:[#allocation2 + $0x8] sm:$0xff]
        %v1646 = vld [vmem:[#allocation2 + $0x10] sm:$0xff]
        %v1647 = vld [vmem:[#allocation2 + $0x18] sm:$0xff]
        %v1648 = vld [vmem:[#allocation2 + $0x20] sm:$0xff]
        %v1649 = vld [vmem:[#allocation2 + $0x28] sm:$0xff]
        %v1650 = vld [vmem:[#allocation2 + $0x30] sm:$0xff]
        %v1651 = vld [vmem:[#allocation2 + $0x38] sm:$0xff]
        %v1664 = vrot.slane %v1632, 5
        %v1665 = vrot.slane %v1664, 4
        %v1666 = vrot.slane %v1633, 5
        %v1667 = vsel %vm595, %v1665, %v1666
        %v1668 = vrot.slane %v1666, 4
        %v1669 = vrot.slane %v1634, 5
        %v1670 = vsel %vm595, %v1668, %v1669
        %v1671 = vrot.slane %v1635, 5
        %v1672 = vrot.slane %v1671, 4
        %v1673 = vrot.slane %v1636, 5
        %v1674 = vsel %vm595, %v1672, %v1673
        %v1675 = vrot.slane %v1673, 4
        %v1676 = vrot.slane %v1637, 5
        %v1677 = vsel %vm595, %v1675, %v1676
        %v1678 = vrot.slane %v1638, 5
        %v1679 = vrot.slane %v1678, 4
        %v1680 = vrot.slane %v1639, 5
        %v1681 = vsel %vm595, %v1679, %v1680
        %v1682 = vrot.slane %v1680, 4
        %v1683 = vrot.slane %v1640, 5
        %v1684 = vsel %vm595, %v1682, %v1683
        %v1685 = vrot.slane %v1641, 5
        %v1686 = vrot.slane %v1685, 4
        %v1687 = vrot.slane %v1642, 5
        %v1688 = vsel %vm595, %v1686, %v1687
        %v1689 = vrot.slane %v1687, 4
        %v1690 = vrot.slane %v1643, 5
        %v1691 = vsel %vm595, %v1689, %v1690
        %s1692 = scalar_lea.vmem %s1, 32
        %v1693 = vld [vmem:[%s1692] sm:$0xf]
        %v1694 = vunpack.c.l.b16 %v1667
        %v1695 = vunpack.c.l.b16 %v1670
        %v1696 = vunpack.c.l.b16 %v1674
        %v1697 = vunpack.c.l.b16 %v1677
        %v1698 = vunpack.c.l.b16 %v1681
        %v1699 = vunpack.c.l.b16 %v1684
        %v1700 = vunpack.c.l.b16 %v1688
        %v1701 = vunpack.c.l.b16 %v1691
        %v1702 = vpack.c.b16 %v1695, %v1694
        %v1703 = vpack.c.b16 %v1697, %v1696
        %v1704 = vpack.c.b16 %v1699, %v1698
        %v1705 = vpack.c.b16 %v1701, %v1700
        %v1707 = vsel %vm234, %v1702, 0
        %v1710 = vsel %vm234, %v1703, 0
        %v1713 = vsel %vm234, %v1704, 0
        %v1716 = vsel %vm234, %v1705, 0
        %v1719 = vsel %vm247, %v1693, 0
        %1721 = vmatprep.subr.bf16.mxu0 0
        %1722 = vmatpush1.bf16.msra.mxu0 0
        %1723 = vmatprep.subr.bf16.mxu0 0
        %1724 = vmatpush1.bf16.msra.mxu0 0
        %1725 = vmatprep.subr.bf16.mxu0 0
        %1726 = vmatpush1.bf16.msra.mxu0 0
        %1727 = vmatprep.subr.bf16.mxu0 0
        %1728 = vmatpush1.bf16.msra.mxu0 0
        %1729 = vmatprep.subr.bf16.mxu0 0
        %1730 = vmatpush1.bf16.msra.mxu0 0
        %1731 = vmatprep.subr.bf16.mxu0 0
        %1732 = vmatpush1.bf16.msra.mxu0 0
        %1733 = vmatprep.subr.bf16.mxu0 0
        %1734 = vmatpush1.bf16.msra.mxu0 0
        %1735 = vmatprep.subr.bf16.mxu0 0
        %1736 = vmatpush1.bf16.msra.mxu0 %v1719
        %1737 = vmatprep.subr.bf16.mxu0 0
        %1738 = vmatpush2.bf16.msra.mxu0 0
        %1739 = vmatprep.subr.bf16.mxu0 0
        %1740 = vmatpush2.bf16.msra.mxu0 0
        %1741 = vmatprep.subr.bf16.mxu0 0
        %1742 = vmatpush2.bf16.msra.mxu0 0
        %1743 = vmatprep.subr.bf16.mxu0 0
        %1744 = vmatpush2.bf16.msra.mxu0 0
        %1745 = vmatprep.subr.bf16.mxu0 0
        %1746 = vmatpush2.bf16.msra.mxu0 0
        %1747 = vmatprep.subr.bf16.mxu0 0
        %1748 = vmatpush2.bf16.msra.mxu0 0
        %1749 = vmatprep.subr.bf16.mxu0 0
        %1750 = vmatpush2.bf16.msra.mxu0 0
        %1751 = vmatprep.subr.bf16.mxu0 0
        %1752 = vmatpush2.bf16.msra.mxu0 0
        %1753 = vmatprep.mubr.bf16.mxu0 0
        %1754 = vmatmul.mubr.bf16.gmra.mxu0 %v1707
        %v1755 = vpop.f32.mrf.mxu0
        %v1756 = vadd.f32 0.0, %v1755
        %v1757 = vpop.f32.mrf.mxu0
        %v1758 = vpop.f32.mrf.mxu0
        %v1759 = vadd.f32 0.0, %v1758
        %v1760 = vpop.f32.mrf.mxu0
        %1761 = vmatprep.mubr.bf16.mxu0 0
        %1762 = vmatmul.mubr.bf16.gmra.mxu0 %v1710
        %v1763 = vpop.f32.mrf.mxu0
        %v1764 = vadd.f32 0.0, %v1763
        %v1765 = vpop.f32.mrf.mxu0
        %v1766 = vpop.f32.mrf.mxu0
        %v1767 = vadd.f32 0.0, %v1766
        %v1768 = vpop.f32.mrf.mxu0
        %1769 = vmatprep.mubr.bf16.mxu0 0
        %1770 = vmatmul.mubr.bf16.gmra.mxu0 %v1713
        %v1771 = vpop.f32.mrf.mxu0
        %v1772 = vadd.f32 0.0, %v1771
        %v1773 = vpop.f32.mrf.mxu0
        %v1774 = vpop.f32.mrf.mxu0
        %v1775 = vadd.f32 0.0, %v1774
        %v1776 = vpop.f32.mrf.mxu0
        %1777 = vmatprep.mubr.bf16.mxu0 0
        %1778 = vmatmul.mubr.bf16.gmra.mxu0 %v1716
        %v1779 = vpop.f32.mrf.mxu0
        %v1780 = vadd.f32 0.0, %v1779
        %v1781 = vpop.f32.mrf.mxu0
        %v1782 = vpop.f32.mrf.mxu0
        %v1783 = vadd.f32 0.0, %v1782
        %v1784 = vpop.f32.mrf.mxu0
        %1785 = vdwg.mxu0
        %v1786 = vadd.f32 %v1644, %v1756
        %v1787 = vadd.f32 %v1645, %v1759
        %v1788 = vadd.f32 %v1646, %v1764
        %v1789 = vadd.f32 %v1647, %v1767
        %v1790 = vadd.f32 %v1648, %v1772
        %v1791 = vadd.f32 %v1649, %v1775
        %v1792 = vadd.f32 %v1650, %v1780
        %v1793 = vadd.f32 %v1651, %v1783
        %1794 = vst [vmem:[#allocation2] sm:$0xff] %v1786
        %1795 = vst [vmem:[#allocation2 + $0x8] sm:$0xff] %v1787
        %1796 = vst [vmem:[#allocation2 + $0x10] sm:$0xff] %v1788
        %1797 = vst [vmem:[#allocation2 + $0x18] sm:$0xff] %v1789
        %1798 = vst [vmem:[#allocation2 + $0x20] sm:$0xff] %v1790
        %1799 = vst [vmem:[#allocation2 + $0x28] sm:$0xff] %v1791
        %1800 = vst [vmem:[#allocation2 + $0x30] sm:$0xff] %v1792
        %1801 = vst [vmem:[#allocation2 + $0x38] sm:$0xff] %v1793
        %v1802 = vld [vmem:[#allocation2] sm:$0xff]
        %v1803 = vld [vmem:[#allocation2 + $0x8] sm:$0xff]
        %v1804 = vld [vmem:[#allocation2 + $0x10] sm:$0xff]
        %v1805 = vld [vmem:[#allocation2 + $0x18] sm:$0xff]
        %v1806 = vld [vmem:[#allocation2 + $0x20] sm:$0xff]
        %v1807 = vld [vmem:[#allocation2 + $0x28] sm:$0xff]
        %v1808 = vld [vmem:[#allocation2 + $0x30] sm:$0xff]
        %v1809 = vld [vmem:[#allocation2 + $0x38] sm:$0xff]
        %v1810 = vld [vmem:[%s2] sm:$0x1]
        %v1812 = vlaneseq
        %v1813 = vshrl.u32 %v1812, 7
        %v1814 = vsub.s32 0, %v1813
        %v1815 = vrot.slane %v1810, %v1814
        %v1817 = vadd.f32 %v1802, %v1815
        %v1818 = vadd.f32 %v1803, %v1815
        %v1819 = vadd.f32 %v1804, %v1815
        %v1820 = vadd.f32 %v1805, %v1815
        %v1821 = vadd.f32 %v1806, %v1815
        %v1822 = vadd.f32 %v1807, %v1815
        %v1823 = vadd.f32 %v1808, %v1815
        %v1824 = vadd.f32 %v1809, %v1815
        %1825 = vst [vmem:[%s177] sm:$0xff] %v1817
        %1826 = vst [vmem:[%s177 + $0x8] sm:$0xff] %v1818
        %1827 = vst [vmem:[%s177 + $0x10] sm:$0xff] %v1819
        %1828 = vst [vmem:[%s177 + $0x18] sm:$0xff] %v1820
        %1829 = vst [vmem:[%s177 + $0x20] sm:$0xff] %v1821
        %1830 = vst [vmem:[%s177 + $0x28] sm:$0xff] %v1822
        %1831 = vst [vmem:[%s177 + $0x30] sm:$0xff] %v1823
        %1832 = vst [vmem:[%s177 + $0x38] sm:$0xff] %v1824
        %s1833 = sand.u32 %s107, 1
        %s1834 = scalar_lea.sflag [#allocation4], %s1833
        %s1835 = sand.u32 %s107, 1
        %s1836 = smul.addr %s1835, 64
        %s1837 = scalar_lea.vmem [#allocation3], %s1836
        // Predicated region
        $region33: #{_forward.1} parent=31 // pred_check
          %p1838 = pneg %p117
        $region34: #{_forward.1} parent=31 // pred_check_branch
          %1840 = sbr.rel (%p1838) target = $region36
        $region35: #{_forward.1} parent=31 // pred_region
          %s1841 = sadd.s32 %s21, %s22
          %s1843 = ssub.s32 1024, 1024
          %1844 = vsyncadd %s1834, %s1843
          %s1845 = smul.addr %s1841, 8
          %s1846 = smul.addr %s1845, 128
          %s1847 = scalar_lea.hbm %s3, %s1846
          %s1848 = sshll.u32 %s1837, 4
          %s1849 = int_to_ptr.vmem [resolvable:$true] %s1848
          %1854 = dma.vmem_to_hbm [thread:$0]  %s1849, 1024, %s1847, %s1834, 128, 128, 8
        $region36: #{_forward.1} parent=31 // pred_fallthru
          _
      $region32: #{_forward.1} parent=5 // pred_fallthru
        _
      %p1855 = scmp.le.s32.totalorder 2, %s12
      // Predicated region
      $region37: #{_forward.1} parent=5 // pred_check
        %p1856 = pneg %p1855
      $region38: #{_forward.1} parent=5 // pred_check_branch
        %1858 = sbr.rel (%p1856) target = $region40
      $region39: #{_forward.1} parent=5 // pred_region
        %s1859 = ssub.s32 %s12, 2
        // Predicated region
        $region41: #{_forward.1} parent=39 // pred_check
          %p1860 = pneg %p123
        $region42: #{_forward.1} parent=39 // pred_check_branch
          %1862 = sbr.rel (%p1860) target = $region44
        $region43: #{_forward.1} parent=39 // pred_region
          %s1863 = sand.u32 %s108, 1
          %s1864 = scalar_lea.sflag [#allocation4], %s1863
          %s1865 = sand.u32 %s108, 1
          %s1866 = smul.addr %s1865, 64
          %s1867 = scalar_lea.vmem [#allocation3], %s1866
          %1868 = dma.done %s1864, 1024
        $region44: #{_forward.1} parent=39 // pred_fallthru
          _
      $region40: #{_forward.1} parent=5 // pred_fallthru
        _
    $region6: #{_forward.1} parent=1 // loop_footer
      %s16 = sadd.s32 1, %s12
    $region7: #{_forward.1} parent=1 // loop_footer_branch
      %11 = sbr.rel target = $region3
    $region8: #{_forward.1} parent=1 // loop_exit
      _
    %1869 = vsyncpa [#allocation4], 1
    %s1870 = scalar_lea.sflag [#allocation4], 1
    %1871 = vsyncpa %s1870, 1

</llo_original>
